<compile_context>
chip_gen: v6e
topology: v6e:2x2x1
jax: 0.10.0
libtpu: 0.0.40
codegen_flags: <defaults>
</compile_context>

<pallas_src>
import functools

import jax
import jax.numpy as jnp
from jax.experimental import pallas as pl
from jax.experimental.pallas import tpu as pltpu


def _round_up(x, m):
    return (x + m - 1) // m * m


# ----------------------------- Pallas kernel ------------------------------- #

def _fused_gcn_kernel(tm, adj_ref, x_ref, w1_ref, b1_ref, w2_ref, b2_ref,
                      out_ref, z1_ref, h_ref, z2_ref):
    """Fused eval-mode 2-layer GCN.

    grid = (phase, row_tile) with 4 sequential phases:
      phase 0 (proj1): Z1[rows] = X[rows] @ W1'            (X streamed)
      phase 1 (agg1):  H[rows]  = relu(A_hat[rows,:] @ Z1 + b1')
      phase 2 (proj2): Z2[rows] = H[rows] @ W2
      phase 3 (agg2):  OUT[rows]= A_hat[rows,:] @ Z2 + b2
    Z1 / H / Z2 live in bf16 VMEM scratch and never round-trip HBM.
    """
    phase = pl.program_id(0)
    rt = pl.program_id(1)
    row0 = pl.multiple_of(rt * tm, tm)
    rows = pl.ds(row0, tm)

    @pl.when(phase == 0)
    def _():
        z1_ref[rows, :] = jnp.dot(
            x_ref[...], w1_ref[...],
            preferred_element_type=jnp.float32).astype(jnp.bfloat16)

    @pl.when(phase == 1)
    def _():
        y = jnp.dot(adj_ref[...], z1_ref[...],
                    preferred_element_type=jnp.float32)
        h = jnp.maximum(y + b1_ref[...], 0.0)          # folded BN bias + ReLU
        h_ref[rows, :] = h.astype(jnp.bfloat16)        # bf16 hidden scratch

    @pl.when(phase == 2)
    def _():
        z2_ref[rows, :] = jnp.dot(
            h_ref[rows, :], w2_ref[...],
            preferred_element_type=jnp.float32).astype(jnp.bfloat16)

    @pl.when(phase == 3)
    def _():
        y = jnp.dot(adj_ref[...], z2_ref[...],
                    preferred_element_type=jnp.float32)
        out_ref[...] = y + b2_ref[...]


def gcn_fused_forward(adj_bf16, x_bf16, w1_bf16, b1_f32, w2_bf16, b2_f32):
    """adj (Np, Np) bf16, x (Np, Cin_p) bf16, weights bf16, biases f32.

    All dims already padded to multiples of 128.  Returns (Np, lane_out) f32.
    """
    np_ = adj_bf16.shape[0]
    cin = x_bf16.shape[1]
    lane_hid = w1_bf16.shape[1]
    lane_out = w2_bf16.shape[1]

    # ---- budget-derived row-tile size and VMEM limit ------------------------
    try:
        info = pltpu.get_tpu_info()
        vmem_physical = int(getattr(info, "vmem_capacity_bytes",
                                    64 * 1024 * 1024))
    except Exception:  # conservative fallback: assume the smallest (v7x) VMEM
        vmem_physical = 64 * 1024 * 1024
    budget = max(32 * 1024 * 1024, (vmem_physical * 3) // 4)

    # Resident VMEM: bf16 Z1 + H + Z2 scratch, plus the constant-index weight /
    # bias blocks (small; default double-buffering accounted for).
    resident = 2 * np_ * (2 * lane_hid + lane_out)
    resident += 2 * 2 * (cin * lane_hid + lane_hid * lane_out)
    resident += 2 * 4 * (lane_hid + lane_out)
    tm = 128
    for cand in (1024, 512, 256, 128):
        if cand <= np_ and np_ % cand == 0:
            per_tile = (2 * cand * np_ * 2          # A_hat slabs (2-buffered)
                        + 2 * cand * cin * 2        # X tiles (2-buffered)
                        + 2 * cand * lane_out * 4)  # output tiles (2-buffered)
            if resident + per_tile <= budget:
                tm = cand
                break
    grid = (4, np_ // tm)

    flops = (2 * np_ * cin * lane_hid            # X @ W1'
             + 2 * np_ * np_ * lane_hid          # A_hat @ Z1
             + 2 * np_ * lane_hid * lane_out     # H @ W2
             + 2 * np_ * np_ * lane_out)         # A_hat @ Z2
    bytes_accessed = (2 * np_ * np_ * 2          # A_hat streamed per agg phase
                      + np_ * cin * 2            # X streamed once
                      + (cin * lane_hid + lane_hid * lane_out) * 2
                      + (lane_hid + lane_out) * 4
                      + np_ * lane_out * 4)      # output writeback

    kernel = functools.partial(_fused_gcn_kernel, tm)
    return pl.pallas_call(
        kernel,
        out_shape=jax.ShapeDtypeStruct((np_, lane_out), jnp.float32),
        grid_spec=pltpu.PrefetchScalarGridSpec(
            num_scalar_prefetch=0,
            grid=grid,
            in_specs=[
                # A_hat row slabs: advance only during aggregation phases 1/3;
                # pinned to slab 0 during projection phases, which doubles as a
                # free prefetch of the slab needed at the next phase's r=0.
                pl.BlockSpec((tm, np_),
                             lambda p, r: (jnp.where(p % 2 == 1, r, 0), 0)),
                # X row tiles: streamed during phase 0 only (not VMEM-resident).
                pl.BlockSpec((tm, cin),
                             lambda p, r: (jnp.where(p == 0, r, 0), 0)),
                # Constant-index weights / biases (small blocks).
                # TODO(synk): single-buffer via pipeline_mode=pl.Buffered(1)
                #             if these ever matter for the VMEM budget.
                pl.BlockSpec((cin, lane_hid), lambda p, r: (0, 0)),       # W1'
                pl.BlockSpec((1, lane_hid), lambda p, r: (0, 0)),         # b1'
                pl.BlockSpec((lane_hid, lane_out), lambda p, r: (0, 0)),  # W2
                pl.BlockSpec((1, lane_out), lambda p, r: (0, 0)),         # b2
            ],
            # Output blocks only advance during the final aggregation phase:
            # no placeholder stores, no garbage HBM writeback during phases 0-2.
            out_specs=pl.BlockSpec((tm, lane_out),
                                   lambda p, r: (jnp.where(p == 3, r, 0), 0)),
            scratch_shapes=[
                pltpu.VMEM((np_, lane_hid), jnp.bfloat16),   # Z1 = X @ W1'
                pltpu.VMEM((np_, lane_hid), jnp.bfloat16),   # H  (bf16 hidden)
                pltpu.VMEM((np_, lane_out), jnp.bfloat16),   # Z2 = H @ W2
            ]),
        compiler_params=pltpu.CompilerParams(
            # Phases and row tiles share the Z/H scratch state -> sequential.
            dimension_semantics=("arbitrary", "arbitrary"),
            vmem_limit_bytes=int(budget)),
        cost_estimate=pl.CostEstimate(flops=int(flops), transcendentals=0,
                                      bytes_accessed=int(bytes_accessed)),
    )(adj_bf16, x_bf16, w1_bf16, b1_f32, w2_bf16, b2_f32)


# ------------------------------- JAX glue ----------------------------------- #

def normalized_adjacency(edge_index, num_nodes):
    """Dense A_hat = D^{-1/2} (A + I) D^{-1/2}, matching PyG GCNConv norm."""
    src = edge_index[0]
    dst = edge_index[1]
    adj = jnp.zeros((num_nodes, num_nodes), jnp.float32)
    adj = adj.at[dst, src].add(1.0)                 # message flows src -> dst
    adj = adj + jnp.eye(num_nodes, dtype=jnp.float32)
    deg = jnp.sum(adj, axis=1)
    d_inv_sqrt = jnp.where(deg > 0, 1.0 / jnp.sqrt(deg), 0.0)
    return adj * d_inv_sqrt[:, None] * d_inv_sqrt[None, :]


def glorot(key, shape):
    fan_in, fan_out = shape
    limit = (6.0 / (fan_in + fan_out)) ** 0.5
    return jax.random.uniform(key, shape, jnp.float32, -limit, limit)


def init_gcn_params(key, in_channels, hidden_channels, out_channels,
                    num_layers=2):
    """Deterministic parameter init mirroring GCN.__init__ shapes."""
    dims = [in_channels] + [hidden_channels] * (num_layers - 1) + [out_channels]
    params = {"convs": [], "bns": []}
    for i in range(num_layers):
        key, wk = jax.random.split(key)
        w = glorot(wk, (dims[i], dims[i + 1]))          # (C_in, C_out)
        b = jnp.zeros((1, dims[i + 1]), jnp.float32)    # GCNConv bias
        params["convs"].append((w, b))
        if i < num_layers - 1:
            h = dims[i + 1]
            params["bns"].append(dict(
                gamma=jnp.ones((1, h), jnp.float32),
                beta=jnp.zeros((1, h), jnp.float32),
                running_mean=jnp.zeros((1, h), jnp.float32),
                running_var=jnp.ones((1, h), jnp.float32),
            ))
    return params


@functools.partial(jax.jit, static_argnums=(3,))
def gcn_forward(node_feat, edge_index, params, num_nodes):
    """Fused 2-layer eval-mode GCN forward (dropout == identity in eval)."""
    (w1, b1), (w2, b2) = params["convs"]
    bn = params["bns"][0]

    n = num_nodes
    in_ch = w1.shape[0]
    hid = w1.shape[1]
    out_ch = w2.shape[1]

    # ---- fold eval-mode BatchNorm1d into the layer-1 weights / bias -------- #
    eps = jnp.float32(1e-5)
    scale = bn["gamma"] * jax.lax.rsqrt(bn["running_var"] + eps)    # (1, hid)
    w1f = w1 * scale                                                # (in, hid)
    b1f = (b1 - bn["running_mean"]) * scale + bn["beta"]            # (1, hid)

    # ---- lane-dense / sublane-aligned padded shapes ------------------------ #
    np_ = _round_up(n, 128)
    cin_p = _round_up(in_ch, 128)
    lane_hid = _round_up(hid, 128)
    lane_out = _round_up(out_ch, 128)   # right-sized: NOT max(hid, out)

    adj = normalized_adjacency(edge_index, n)
    adj_p = jnp.zeros((np_, np_), jnp.float32).at[:n, :n].set(adj)
    x_p = jnp.zeros((np_, cin_p), jnp.float32).at[:n, :in_ch].set(
        node_feat.astype(jnp.float32))

    w1_p = jnp.zeros((cin_p, lane_hid), jnp.float32).at[:in_ch, :hid].set(w1f)
    b1_p = jnp.zeros((1, lane_hid), jnp.float32).at[:, :hid].set(b1f)
    w2_p = jnp.zeros((lane_hid, lane_out), jnp.float32).at[:hid, :out_ch].set(w2)
    b2_p = jnp.zeros((1, lane_out), jnp.float32).at[:, :out_ch].set(b2)

    out_p = gcn_fused_forward(adj_p.astype(jnp.bfloat16),
                              x_p.astype(jnp.bfloat16),
                              w1_p.astype(jnp.bfloat16), b1_p,
                              w2_p.astype(jnp.bfloat16), b2_p)
    return out_p[:n, :out_ch]


def gcn_reference(node_feat, edge_index, params, num_nodes):
    """Pure-JAX f32 reference (eval-mode BN, no dropout) for validation."""
    adj = normalized_adjacency(edge_index, num_nodes)
    x = node_feat.astype(jnp.float32)
    (w1, b1), (w2, b2) = params["convs"]
    bn = params["bns"][0]
    h = adj @ (x @ w1) + b1
    h = ((h - bn["running_mean"])
         * jax.lax.rsqrt(bn["running_var"] + 1e-5) * bn["gamma"] + bn["beta"])
    h = jnp.maximum(h, 0.0)
    return adj @ (h @ w2) + b2


# --------------------------------- main ------------------------------------- #

if __name__ == "__main__":
    key = jax.random.PRNGKey(0)
    k_feat, k_edge, k_params = jax.random.split(key, 3)

    num_nodes = 64
    in_channels = 16
    hidden_channels = 32
    out_channels = 8
    num_edges = 128

    node_feat = jax.random.normal(k_feat, (num_nodes, in_channels), jnp.float32)
    edge_index = jax.random.randint(k_edge, (2, num_edges), 0, num_nodes,
                                    dtype=jnp.int32)

    params = init_gcn_params(k_params, in_channels, hidden_channels,
                             out_channels, num_layers=2)

    out = gcn_forward(node_feat, edge_index, params, num_nodes)
    out = jax.block_until_ready(out)

    assert out.shape == (num_nodes, out_channels), out.shape
    assert jnp.all(jnp.isfinite(out))

    # Validate against the f32 reference (bf16 MXU operands => loose tolerance).
    ref = gcn_reference(node_feat, edge_index, params, num_nodes)
    max_err = float(jnp.max(jnp.abs(out - ref)))
    assert max_err < 0.1, f"max abs error {max_err}"

    print("KERNEL_OK")
</pallas_src>

<mosaic_0001>
module attributes {stable_mosaic.version = 11 : i64} {
  func.func private @main(%arg0: i32) attributes {dimension_semantics = [#tpu.dimension_semantics<core_parallel>], iteration_bounds = array<i64: 2>, tpu.core_type = #tpu.core_type<sc_scalar_subcore>, window_params = []} {
    return
  }
}

module attributes {stable_mosaic.version = 11 : i64} {
  func.func private @main(%arg0: i32) attributes {dimension_semantics = [#tpu.dimension_semantics<core_parallel>], iteration_bounds = array<i64: 2>, tpu.core_type = #tpu.core_type<sc_scalar_subcore>, window_params = []} {
    return
  }
}

module attributes {stable_mosaic.version = 11 : i64} {
  func.func @_fused_gcn_kernel(%arg0: i32, %arg1: i32, %arg2: memref<128x128xbf16, #tpu.memory_space<vmem>>, %arg3: memref<128x128xbf16, #tpu.memory_space<vmem>>, %arg4: memref<128x128xbf16, #tpu.memory_space<vmem>>, %arg5: memref<1x128xf32, #tpu.memory_space<vmem>>, %arg6: memref<128x128xbf16, #tpu.memory_space<vmem>>, %arg7: memref<1x128xf32, #tpu.memory_space<vmem>>, %arg8: memref<128x128xf32, #tpu.memory_space<vmem>>, %arg9: memref<128x128xbf16, #tpu.memory_space<vmem>>, %arg10: memref<128x128xbf16, #tpu.memory_space<vmem>>, %arg11: memref<128x128xbf16, #tpu.memory_space<vmem>>) attributes {dimension_semantics = [#tpu.dimension_semantics<arbitrary>, #tpu.dimension_semantics<arbitrary>], iteration_bounds = array<i64: 4, 1>, scalar_prefetch = 0 : i64, scratch_operands = 3 : i64, tpu.core_type = #tpu.core_type<tc>, window_params = [{transform_indices = @transform_0, window_bounds = array<i64: 128, 128>}, {transform_indices = @transform_1, window_bounds = array<i64: 128, 128>}, {pipeline_mode = #tpu.pipeline_mode<synchronous>, transform_indices = @transform_2, window_bounds = array<i64: 128, 128>}, {pipeline_mode = #tpu.pipeline_mode<synchronous>, transform_indices = @transform_3, window_bounds = array<i64: 1, 128>}, {pipeline_mode = #tpu.pipeline_mode<synchronous>, transform_indices = @transform_4, window_bounds = array<i64: 128, 128>}, {pipeline_mode = #tpu.pipeline_mode<synchronous>, transform_indices = @transform_5, window_bounds = array<i64: 1, 128>}, {transform_indices = @transform_6, window_bounds = array<i64: 128, 128>}]} {
    %c128_i32 = arith.constant 128 : i32
    %0 = arith.muli %arg1, %c128_i32 : i32
    %1 = tpu.assume_multiple %0, 128 : i32
    %c0_i32 = arith.constant 0 : i32
    %2 = arith.cmpi eq, %arg0, %c0_i32 : i32
    %3 = arith.extui %2 : i1 to i32
    %c0_i32_0 = arith.constant 0 : i32
    %4 = arith.cmpi ne, %3, %c0_i32_0 : i32
    scf.if %4 {
      %c0 = arith.constant 0 : index
      %c0_4 = arith.constant 0 : index
      %14 = vector.load %arg3[%c0, %c0_4] : memref<128x128xbf16, #tpu.memory_space<vmem>>, vector<128x128xbf16>
      %c0_5 = arith.constant 0 : index
      %c0_6 = arith.constant 0 : index
      %15 = vector.load %arg4[%c0_5, %c0_6] : memref<128x128xbf16, #tpu.memory_space<vmem>>, vector<128x128xbf16>
      %cst = arith.constant dense<0.000000e+00> : vector<128x128xf32>
      %16 = tpu.matmul %14, %15, %cst {dimension_numbers = #tpu.dot_dimension_numbers<[1], [0], [0], [1], [0, 0, 1, 1], [], []>} : vector<128x128xbf16>, vector<128x128xbf16>, vector<128x128xf32> -> vector<128x128xf32>
      %17 = arith.truncf %16 : vector<128x128xf32> to vector<128x128xbf16>
      %18 = arith.index_cast %1 : i32 to index
      %c0_7 = arith.constant 0 : index
      %19 = vector.load %arg9[%18, %c0_7] : memref<128x128xbf16, #tpu.memory_space<vmem>>, vector<128x128xbf16>
      tpu.vector_store %arg9[%18, %c0_7], %17 {strides = array<i32>} : memref<128x128xbf16, #tpu.memory_space<vmem>>, vector<128x128xbf16>,
    } else {
    }
    %c1_i32 = arith.constant 1 : i32
    %5 = arith.cmpi eq, %arg0, %c1_i32 : i32
    %6 = arith.extui %5 : i1 to i32
    %c0_i32_1 = arith.constant 0 : i32
    %7 = arith.cmpi ne, %6, %c0_i32_1 : i32
    scf.if %7 {
      %c0 = arith.constant 0 : index
      %c0_4 = arith.constant 0 : index
      %14 = vector.load %arg2[%c0, %c0_4] : memref<128x128xbf16, #tpu.memory_space<vmem>>, vector<128x128xbf16>
      %c0_5 = arith.constant 0 : index
      %c0_6 = arith.constant 0 : index
      %15 = vector.load %arg9[%c0_5, %c0_6] : memref<128x128xbf16, #tpu.memory_space<vmem>>, vector<128x128xbf16>
      %cst = arith.constant dense<0.000000e+00> : vector<128x128xf32>
      %16 = tpu.matmul %14, %15, %cst {dimension_numbers = #tpu.dot_dimension_numbers<[1], [0], [0], [1], [0, 0, 1, 1], [], []>} : vector<128x128xbf16>, vector<128x128xbf16>, vector<128x128xf32> -> vector<128x128xf32>
      %c0_7 = arith.constant 0 : index
      %c0_8 = arith.constant 0 : index
      %17 = vector.load %arg5[%c0_7, %c0_8] : memref<1x128xf32, #tpu.memory_space<vmem>>, vector<1x128xf32>
      %18 = vector.broadcast %17 : vector<1x128xf32> to vector<128x128xf32>
      %19 = arith.addf %16, %18 : vector<128x128xf32>
      %cst_9 = arith.constant 0.000000e+00 : f32
      %20 = vector.broadcast %cst_9 : f32 to vector<128x128xf32>
      %21 = arith.maximumf %19, %20 : vector<128x128xf32>
      %22 = arith.truncf %21 : vector<128x128xf32> to vector<128x128xbf16>
      %23 = arith.index_cast %1 : i32 to index
      %c0_10 = arith.constant 0 : index
      %24 = vector.load %arg10[%23, %c0_10] : memref<128x128xbf16, #tpu.memory_space<vmem>>, vector<128x128xbf16>
      tpu.vector_store %arg10[%23, %c0_10], %22 {strides = array<i32>} : memref<128x128xbf16, #tpu.memory_space<vmem>>, vector<128x128xbf16>,
    } else {
    }
    %c2_i32 = arith.constant 2 : i32
    %8 = arith.cmpi eq, %arg0, %c2_i32 : i32
    %9 = arith.extui %8 : i1 to i32
    %c0_i32_2 = arith.constant 0 : i32
    %10 = arith.cmpi ne, %9, %c0_i32_2 : i32
    scf.if %10 {
      %14 = arith.index_cast %1 : i32 to index
      %c0 = arith.constant 0 : index
      %15 = vector.load %arg10[%14, %c0] : memref<128x128xbf16, #tpu.memory_space<vmem>>, vector<128x128xbf16>
      %c0_4 = arith.constant 0 : index
      %c0_5 = arith.constant 0 : index
      %16 = vector.load %arg6[%c0_4, %c0_5] : memref<128x128xbf16, #tpu.memory_space<vmem>>, vector<128x128xbf16>
      %cst = arith.constant dense<0.000000e+00> : vector<128x128xf32>
      %17 = tpu.matmul %15, %16, %cst {dimension_numbers = #tpu.dot_dimension_numbers<[1], [0], [0], [1], [0, 0, 1, 1], [], []>} : vector<128x128xbf16>, vector<128x128xbf16>, vector<128x128xf32> -> vector<128x128xf32>
      %18 = arith.truncf %17 : vector<128x128xf32> to vector<128x128xbf16>
      %19 = arith.index_cast %1 : i32 to index
      %c0_6 = arith.constant 0 : index
      %20 = vector.load %arg11[%19, %c0_6] : memref<128x128xbf16, #tpu.memory_space<vmem>>, vector<128x128xbf16>
      tpu.vector_store %arg11[%19, %c0_6], %18 {strides = array<i32>} : memref<128x128xbf16, #tpu.memory_space<vmem>>, vector<128x128xbf16>,
    } else {
    }
    %c3_i32 = arith.constant 3 : i32
    %11 = arith.cmpi eq, %arg0, %c3_i32 : i32
    %12 = arith.extui %11 : i1 to i32
    %c0_i32_3 = arith.constant 0 : i32
    %13 = arith.cmpi ne, %12, %c0_i32_3 : i32
    scf.if %13 {
      %c0 = arith.constant 0 : index
      %c0_4 = arith.constant 0 : index
      %14 = vector.load %arg2[%c0, %c0_4] : memref<128x128xbf16, #tpu.memory_space<vmem>>, vector<128x128xbf16>
      %c0_5 = arith.constant 0 : index
      %c0_6 = arith.constant 0 : index
      %15 = vector.load %arg11[%c0_5, %c0_6] : memref<128x128xbf16, #tpu.memory_space<vmem>>, vector<128x128xbf16>
      %cst = arith.constant dense<0.000000e+00> : vector<128x128xf32>
      %16 = tpu.matmul %14, %15, %cst {dimension_numbers = #tpu.dot_dimension_numbers<[1], [0], [0], [1], [0, 0, 1, 1], [], []>} : vector<128x128xbf16>, vector<128x128xbf16>, vector<128x128xf32> -> vector<128x128xf32>
      %c0_7 = arith.constant 0 : index
      %c0_8 = arith.constant 0 : index
      %17 = vector.load %arg7[%c0_7, %c0_8] : memref<1x128xf32, #tpu.memory_space<vmem>>, vector<1x128xf32>
      %18 = vector.broadcast %17 : vector<1x128xf32> to vector<128x128xf32>
      %19 = arith.addf %16, %18 : vector<128x128xf32>
      %c0_9 = arith.constant 0 : index
      %c0_10 = arith.constant 0 : index
      %20 = vector.load %arg8[%c0_9, %c0_10] : memref<128x128xf32, #tpu.memory_space<vmem>>, vector<128x128xf32>
      tpu.vector_store %arg8[%c0_9, %c0_10], %19 {strides = array<i32>} : memref<128x128xf32, #tpu.memory_space<vmem>>, vector<128x128xf32>,
    } else {
    }
    return
  }
  func.func @transform_0(%arg0: i32, %arg1: i32) -> (i32, i32) {
    %c2_i32 = arith.constant 2 : i32
    %c0_i32 = arith.constant 0 : i32
    %0 = arith.cmpi eq, %c2_i32, %c0_i32 : i32
    %c1_i32 = arith.constant 1 : i32
    %1 = arith.select %0, %c1_i32, %c2_i32 : i32
    %2 = arith.remsi %arg0, %1 : i32
    %c0_i32_0 = arith.constant 0 : i32
    %3 = arith.cmpi ne, %2, %c0_i32_0 : i32
    %c0_i32_1 = arith.constant 0 : i32
    %4 = arith.cmpi slt, %2, %c0_i32_1 : i32
    %c0_i32_2 = arith.constant 0 : i32
    %5 = arith.cmpi slt, %1, %c0_i32_2 : i32
    %6 = arith.xori %4, %5 : i1
    %7 = arith.andi %6, %3 : i1
    %8 = arith.addi %2, %1 : i32
    %9 = arith.select %7, %8, %2 : i32
    %c1_i32_3 = arith.constant 1 : i32
    %10 = arith.cmpi eq, %9, %c1_i32_3 : i32
    %c0_i32_4 = arith.constant 0 : i32
    %11 = arith.select %10, %arg1, %c0_i32_4 : i32
    %c0_i32_5 = arith.constant 0 : i32
    %c0_i32_6 = arith.constant 0 : i32
    return %11, %c0_i32_5 : i32, i32
  }
  func.func @transform_1(%arg0: i32, %arg1: i32) -> (i32, i32) {
    %c0_i32 = arith.constant 0 : i32
    %0 = arith.cmpi eq, %arg0, %c0_i32 : i32
    %c0_i32_0 = arith.constant 0 : i32
    %1 = arith.select %0, %arg1, %c0_i32_0 : i32
    %c0_i32_1 = arith.constant 0 : i32
    %c0_i32_2 = arith.constant 0 : i32
    return %1, %c0_i32_1 : i32, i32
  }
  func.func @transform_2(%arg0: i32, %arg1: i32) -> (i32, i32) {
    %c0_i32 = arith.constant 0 : i32
    %c0_i32_0 = arith.constant 0 : i32
    %c0_i32_1 = arith.constant 0 : i32
    return %c0_i32, %c0_i32_0 : i32, i32
  }
  func.func @transform_3(%arg0: i32, %arg1: i32) -> (i32, i32) {
    %c0_i32 = arith.constant 0 : i32
    %c0_i32_0 = arith.constant 0 : i32
    %c0_i32_1 = arith.constant 0 : i32
    return %c0_i32, %c0_i32_0 : i32, i32
  }
  func.func @transform_4(%arg0: i32, %arg1: i32) -> (i32, i32) {
    %c0_i32 = arith.constant 0 : i32
    %c0_i32_0 = arith.constant 0 : i32
    %c0_i32_1 = arith.constant 0 : i32
    return %c0_i32, %c0_i32_0 : i32, i32
  }
  func.func @transform_5(%arg0: i32, %arg1: i32) -> (i32, i32) {
    %c0_i32 = arith.constant 0 : i32
    %c0_i32_0 = arith.constant 0 : i32
    %c0_i32_1 = arith.constant 0 : i32
    return %c0_i32, %c0_i32_0 : i32, i32
  }
  func.func @transform_6(%arg0: i32, %arg1: i32) -> (i32, i32) {
    %c3_i32 = arith.constant 3 : i32
    %0 = arith.cmpi eq, %arg0, %c3_i32 : i32
    %c0_i32 = arith.constant 0 : i32
    %1 = arith.select %0, %arg1, %c0_i32 : i32
    %c0_i32_0 = arith.constant 0 : i32
    %c0_i32_1 = arith.constant 0 : i32
    return %1, %c0_i32_0 : i32, i32
  }
}

</mosaic_0001>

<llo_original>
// kernel: gcn_forward.1
$region0: #{gcn_forward.1}
  #allocation0 [shape = 'u32[]', space=smem, size = 0x4, offset = 0x4, fixed_abs, tag = 'smem constant byte address 0x4 - core index']
  #allocation1 [shape = 'u32[144,128]{1,0:T(1,128)}', space=vmem, size = 0x12000, scoped, tag = 'internal scratch']
  #allocation2 [shape = 'bf16[128,128]{1,0:T(8,128)(2,1)}', space=vmem, size = 0x8000, scoped, tag = 'scratch operand']
  #allocation3 [shape = 'bf16[128,128]{1,0:T(8,128)(2,1)}', space=vmem, size = 0x8000, scoped, tag = 'scratch operand']
  #allocation4 [shape = 'bf16[128,128]{1,0:T(8,128)(2,1)}', space=vmem, size = 0x8000, scoped, tag = 'scratch operand']
  %s0 = inlined_call_operand.vmem [shape: bf16[128,128], index: 0, kind: input, shape index: {}]
  %s1 = inlined_call_operand.vmem [shape: bf16[128,128], index: 1, kind: input, shape index: {}]
  %s2 = inlined_call_operand.vmem [shape: bf16[128,128], index: 2, kind: input, shape index: {}]
  %s3 = inlined_call_operand.vmem [shape: f32[1,128], index: 3, kind: input, shape index: {}]
  %s4 = inlined_call_operand.vmem [shape: bf16[128,128], index: 4, kind: input, shape index: {}]
  %s5 = inlined_call_operand.vmem [shape: f32[1,128], index: 5, kind: input, shape index: {}]
  %s6 = inlined_call_operand.vmem [shape: f32[128,128], index: 6, kind: output, shape index: {}]
  %s7 = sld [smem:[#allocation0]]
  $region73: #{gcn_forward.1} parent=0
    _
  %s9 = ssub.s32 1, %s7
  %s10 = scalar_select 0, %s9, %s7
  loop: start=0, step=1, limit=6
  $region2: #{gcn_forward.1} parent=0 // loop_pre_header
    _
  $region3: #{gcn_forward.1} parent=0 // loop_header
    %s12 = sphi 0, %s16
    %p13 = scmp.ge.s32.totalorder %s12, 6
    %s19 = sphi 0, %s31
    %s20 = sphi 0, %s27
    %s21 = sphi 0, %s19
    %s22 = sphi 0, %s20
    %s23 = sphi 0, %s21
    %s24 = sphi 0, %s22
    %s62 = sphi 0, %s64
    %s65 = sphi 0, %s62
    %s66 = sphi 0, %s65
    %s82 = sphi 0, %s66
    %s92 = sphi 0, %s94
    %s95 = sphi 0, %s92
    %s96 = sphi 0, %s95
    %s112 = sphi 0, %s96
    %s116 = sphi 0, %s116
    %s118 = sphi 0, %s116
    %s119 = sphi 0, %s118
    %s133 = sphi 0, %s119
    %s137 = sphi 0, %s137
    %s139 = sphi 0, %s137
    %s140 = sphi 0, %s139
    %s154 = sphi 0, %s140
    %s158 = sphi 0, %s158
    %s160 = sphi 0, %s158
    %s161 = sphi 0, %s160
    %s175 = sphi 0, %s161
    %s179 = sphi 0, %s179
    %s181 = sphi 0, %s179
    %s182 = sphi 0, %s181
    %s196 = sphi 0, %s182
    %s206 = sphi 0, %s208
    %s209 = sphi 0, %s206
    %s210 = sphi 0, %s209
    %s226 = sphi 0, %s210
  $region4: #{gcn_forward.1} parent=0 // loop_header_branch
    %15 = sbr.rel (%p13) target = $region8
  $region5: #{gcn_forward.1} parent=0 // loop_body
    %s17 = ssub.s32 %s12, 1
    %s18 = ssub.s32 %s12, 2
    %s25 = sadd.s32 1, %s20
    %p26 = scmp.ge.s32.totalorder %s25, 1
    %s27 = scalar_select %p26, 0, %s25
    %s28 = sadd.s32 1, %s19
    %s29 = scalar_select %p26, %s28, %s19
    %p30 = scmp.ge.s32.totalorder %s29, 4
    %s31 = scalar_select %p30, 0, %s29
    %p32 = scmp.lt.s32.totalorder %s19, 0
    %s33 = ssub.s32 0, %s19
    %s34 = scalar_select %p32, %s33, %s19
    %s35 = sand.u32 %s34, 1
    %s36 = ssub.s32 0, %s35
    %s37 = scalar_select %p32, %s36, %s35
    %p38 = scmp.ne.s32.totalorder %s37, 0
    %p39 = scmp.lt.s32.totalorder %s37, 0
    %p40 = pnand %p39, %p38
    %p41 = pneg %p40
    %s42 = sadd.s32 %s37, 2
    %s43 = scalar_select %p41, %s42, %s37
    %p44 = scmp.eq.s32.totalorder %s43, 1
    %s45 = scalar_select %p44, %s20, 0
    %p46 = scmp.lt.s32.totalorder %s31, 0
    %s47 = ssub.s32 0, %s31
    %s48 = scalar_select %p46, %s47, %s31
    %s49 = sand.u32 %s48, 1
    %s50 = ssub.s32 0, %s49
    %s51 = scalar_select %p46, %s50, %s49
    %p52 = scmp.ne.s32.totalorder %s51, 0
    %p53 = scmp.lt.s32.totalorder %s51, 0
    %p54 = pnand %p53, %p52
    %p55 = pneg %p54
    %s56 = sadd.s32 %s51, 2
    %s57 = scalar_select %p55, %s56, %s51
    %p58 = scmp.eq.s32.totalorder %s57, 1
    %s59 = scalar_select %p58, %s27, 0
    %s60 = ssub.s32 %s45, %s59
    %p61 = scmp.eq.s32.totalorder %s60, 0
    %s63 = sadd.s32 %s62, 1
    %s64 = scalar_select %p61, %s62, %s63
    %p67 = pneg %p61
    %p68 = scmp.eq.s32.totalorder %s12, 3
    %p69 = por %p67, %p68
    %p70 = scmp.ne.s32.totalorder %s62, %s65
    %p71 = scmp.eq.s32.totalorder %s12, 0
    %p72 = por %p70, %p71
    %p73 = scmp.ne.s32.totalorder %s62, %s65
    %p74 = scmp.eq.s32.totalorder %s17, 3
    %p75 = por %p73, %p74
    %p76 = scmp.ne.s32.totalorder %s65, %s66
    %p77 = scmp.eq.s32.totalorder %s17, 0
    %p78 = por %p76, %p77
    %p79 = scmp.ne.s32.totalorder %s65, %s66
    %p80 = scmp.eq.s32.totalorder %s18, 3
    %p81 = por %p79, %p80
    %p83 = scmp.ne.s32.totalorder %s66, %s82
    %p84 = scmp.eq.s32.totalorder %s18, 0
    %p85 = por %p83, %p84
    %p86 = scmp.eq.s32.totalorder %s19, 0
    %s87 = scalar_select %p86, %s20, 0
    %p88 = scmp.eq.s32.totalorder %s31, 0
    %s89 = scalar_select %p88, %s27, 0
    %s90 = ssub.s32 %s87, %s89
    %p91 = scmp.eq.s32.totalorder %s90, 0
    %s93 = sadd.s32 %s92, 1
    %s94 = scalar_select %p91, %s92, %s93
    %p97 = pneg %p91
    %p98 = scmp.eq.s32.totalorder %s12, 3
    %p99 = por %p97, %p98
    %p100 = scmp.ne.s32.totalorder %s92, %s95
    %p101 = scmp.eq.s32.totalorder %s12, 0
    %p102 = por %p100, %p101
    %p103 = scmp.ne.s32.totalorder %s92, %s95
    %p104 = scmp.eq.s32.totalorder %s17, 3
    %p105 = por %p103, %p104
    %p106 = scmp.ne.s32.totalorder %s95, %s96
    %p107 = scmp.eq.s32.totalorder %s17, 0
    %p108 = por %p106, %p107
    %p109 = scmp.ne.s32.totalorder %s95, %s96
    %p110 = scmp.eq.s32.totalorder %s18, 3
    %p111 = por %p109, %p110
    %p113 = scmp.ne.s32.totalorder %s96, %s112
    %p114 = scmp.eq.s32.totalorder %s18, 0
    %p115 = por %p113, %p114
    %s117 = sadd.s32 %s116, 1
    %p120 = scmp.eq.s32.totalorder %s12, 3
    %p121 = scmp.ne.s32.totalorder %s116, %s118
    %p122 = scmp.eq.s32.totalorder %s12, 0
    %p123 = por %p121, %p122
    %p124 = scmp.ne.s32.totalorder %s116, %s118
    %p125 = scmp.eq.s32.totalorder %s17, 3
    %p126 = por %p124, %p125
    %p127 = scmp.ne.s32.totalorder %s118, %s119
    %p128 = scmp.eq.s32.totalorder %s17, 0
    %p129 = por %p127, %p128
    %p130 = scmp.ne.s32.totalorder %s118, %s119
    %p131 = scmp.eq.s32.totalorder %s18, 3
    %p132 = por %p130, %p131
    %p134 = scmp.ne.s32.totalorder %s119, %s133
    %p135 = scmp.eq.s32.totalorder %s18, 0
    %p136 = por %p134, %p135
    %s138 = sadd.s32 %s137, 1
    %p141 = scmp.eq.s32.totalorder %s12, 3
    %p142 = scmp.ne.s32.totalorder %s137, %s139
    %p143 = scmp.eq.s32.totalorder %s12, 0
    %p144 = por %p142, %p143
    %p145 = scmp.ne.s32.totalorder %s137, %s139
    %p146 = scmp.eq.s32.totalorder %s17, 3
    %p147 = por %p145, %p146
    %p148 = scmp.ne.s32.totalorder %s139, %s140
    %p149 = scmp.eq.s32.totalorder %s17, 0
    %p150 = por %p148, %p149
    %p151 = scmp.ne.s32.totalorder %s139, %s140
    %p152 = scmp.eq.s32.totalorder %s18, 3
    %p153 = por %p151, %p152
    %p155 = scmp.ne.s32.totalorder %s140, %s154
    %p156 = scmp.eq.s32.totalorder %s18, 0
    %p157 = por %p155, %p156
    %s159 = sadd.s32 %s158, 1
    %p162 = scmp.eq.s32.totalorder %s12, 3
    %p163 = scmp.ne.s32.totalorder %s158, %s160
    %p164 = scmp.eq.s32.totalorder %s12, 0
    %p165 = por %p163, %p164
    %p166 = scmp.ne.s32.totalorder %s158, %s160
    %p167 = scmp.eq.s32.totalorder %s17, 3
    %p168 = por %p166, %p167
    %p169 = scmp.ne.s32.totalorder %s160, %s161
    %p170 = scmp.eq.s32.totalorder %s17, 0
    %p171 = por %p169, %p170
    %p172 = scmp.ne.s32.totalorder %s160, %s161
    %p173 = scmp.eq.s32.totalorder %s18, 3
    %p174 = por %p172, %p173
    %p176 = scmp.ne.s32.totalorder %s161, %s175
    %p177 = scmp.eq.s32.totalorder %s18, 0
    %p178 = por %p176, %p177
    %s180 = sadd.s32 %s179, 1
    %p183 = scmp.eq.s32.totalorder %s12, 3
    %p184 = scmp.ne.s32.totalorder %s179, %s181
    %p185 = scmp.eq.s32.totalorder %s12, 0
    %p186 = por %p184, %p185
    %p187 = scmp.ne.s32.totalorder %s179, %s181
    %p188 = scmp.eq.s32.totalorder %s17, 3
    %p189 = por %p187, %p188
    %p190 = scmp.ne.s32.totalorder %s181, %s182
    %p191 = scmp.eq.s32.totalorder %s17, 0
    %p192 = por %p190, %p191
    %p193 = scmp.ne.s32.totalorder %s181, %s182
    %p194 = scmp.eq.s32.totalorder %s18, 3
    %p195 = por %p193, %p194
    %p197 = scmp.ne.s32.totalorder %s182, %s196
    %p198 = scmp.eq.s32.totalorder %s18, 0
    %p199 = por %p197, %p198
    %p200 = scmp.eq.s32.totalorder %s19, 3
    %s201 = scalar_select %p200, %s20, 0
    %p202 = scmp.eq.s32.totalorder %s31, 3
    %s203 = scalar_select %p202, %s27, 0
    %s204 = ssub.s32 %s201, %s203
    %p205 = scmp.eq.s32.totalorder %s204, 0
    %s207 = sadd.s32 %s206, 1
    %s208 = scalar_select %p205, %s206, %s207
    %p211 = pneg %p205
    %p212 = scmp.eq.s32.totalorder %s12, 3
    %p213 = por %p211, %p212
    %p214 = scmp.ne.s32.totalorder %s206, %s209
    %p215 = scmp.eq.s32.totalorder %s12, 0
    %p216 = por %p214, %p215
    %p217 = scmp.ne.s32.totalorder %s206, %s209
    %p218 = scmp.eq.s32.totalorder %s17, 3
    %p219 = por %p217, %p218
    %p220 = scmp.ne.s32.totalorder %s209, %s210
    %p221 = scmp.eq.s32.totalorder %s17, 0
    %p222 = por %p220, %p221
    %p223 = scmp.ne.s32.totalorder %s209, %s210
    %p224 = scmp.eq.s32.totalorder %s18, 3
    %p225 = por %p223, %p224
    %p227 = scmp.ne.s32.totalorder %s210, %s226
    %p228 = scmp.eq.s32.totalorder %s18, 0
    %p229 = por %p227, %p228
    %p230 = scmp.le.s32.totalorder 1, %s12
    %p231 = scmp.lt.s32.totalorder %s12, 5
    %p232 = pnand %p230, %p231
    %p233 = pneg %p232
    // Predicated region
    $region9: #{gcn_forward.1} parent=5 // pred_check
      _
    $region10: #{gcn_forward.1} parent=5 // pred_check_branch
      %235 = sbr.rel (%p232) target = $region12
    $region11: #{gcn_forward.1} parent=5 // pred_region
      %s236 = ssub.s32 %s12, 1
      // Predicated region
      $region13: #{gcn_forward.1} parent=11 // pred_check
        %p237 = pneg %p129
      $region14: #{gcn_forward.1} parent=11 // pred_check_branch
        %239 = sbr.rel (%p237) target = $region16
      $region15: #{gcn_forward.1} parent=11 // pred_region
        _
      $region16: #{gcn_forward.1} parent=11 // pred_fallthru
        _
      // Predicated region
      $region17: #{gcn_forward.1} parent=11 // pred_check
        %p240 = pneg %p150
      $region18: #{gcn_forward.1} parent=11 // pred_check_branch
        %242 = sbr.rel (%p240) target = $region20
      $region19: #{gcn_forward.1} parent=11 // pred_region
        _
      $region20: #{gcn_forward.1} parent=11 // pred_fallthru
        _
      // Predicated region
      $region21: #{gcn_forward.1} parent=11 // pred_check
        %p243 = pneg %p171
      $region22: #{gcn_forward.1} parent=11 // pred_check_branch
        %245 = sbr.rel (%p243) target = $region24
      $region23: #{gcn_forward.1} parent=11 // pred_region
        _
      $region24: #{gcn_forward.1} parent=11 // pred_fallthru
        _
      // Predicated region
      $region25: #{gcn_forward.1} parent=11 // pred_check
        %p246 = pneg %p192
      $region26: #{gcn_forward.1} parent=11 // pred_check_branch
        %248 = sbr.rel (%p246) target = $region28
      $region27: #{gcn_forward.1} parent=11 // pred_region
        _
      $region28: #{gcn_forward.1} parent=11 // pred_fallthru
        _
    $region12: #{gcn_forward.1} parent=5 // pred_fallthru
      _
    %p249 = scmp.lt.s32.totalorder %s12, 4
    // Predicated region
    $region29: #{gcn_forward.1} parent=5 // pred_check
      %p250 = pneg %p249
    $region30: #{gcn_forward.1} parent=5 // pred_check_branch
      %252 = sbr.rel (%p250) target = $region32
    $region31: #{gcn_forward.1} parent=5 // pred_region
      // Predicated region
      $region33: #{gcn_forward.1} parent=31 // pred_check
        %p253 = pneg %p72
      $region34: #{gcn_forward.1} parent=31 // pred_check_branch
        %255 = sbr.rel (%p253) target = $region36
      $region35: #{gcn_forward.1} parent=31 // pred_region
        %p256 = scmp.lt.s32.totalorder %s19, 0
        %s257 = ssub.s32 0, %s19
        %s258 = scalar_select %p256, %s257, %s19
        %s259 = sand.u32 %s258, 1
        %s260 = ssub.s32 0, %s259
        %s261 = scalar_select %p256, %s260, %s259
        %p262 = scmp.ne.s32.totalorder %s261, 0
        %p263 = scmp.lt.s32.totalorder %s261, 0
        %p264 = pnand %p263, %p262
        %p265 = pneg %p264
        %s266 = sadd.s32 %s261, 2
        %s267 = scalar_select %p265, %s266, %s261
        %p268 = scmp.eq.s32.totalorder %s267, 1
        %s269 = scalar_select %p268, %s20, 0
        %s270 = smul.u32 16, %s269
        %p271 = scmp.lt.s32.totalorder %s270, 15
        %s272 = scalar_select %p271, %s270, 15
        %s273 = smul.addr %s272, 4
        %s274 = scalar_lea.vmem %s0, %s273
        %p275 = scmp.lt.s32.totalorder %s19, 0
        %s276 = ssub.s32 0, %s19
        %s277 = scalar_select %p275, %s276, %s19
        %s278 = sand.u32 %s277, 1
        %s279 = ssub.s32 0, %s278
        %s280 = scalar_select %p275, %s279, %s278
        %p281 = scmp.ne.s32.totalorder %s280, 0
        %p282 = scmp.lt.s32.totalorder %s280, 0
        %p283 = pnand %p282, %p281
        %p284 = pneg %p283
        %s285 = sadd.s32 %s280, 2
        %s286 = scalar_select %p284, %s285, %s280
        %p287 = scmp.eq.s32.totalorder %s286, 1
        %s288 = scalar_select %p287, %s20, 0
        %s289 = smul.u32 16, %s288
      $region36: #{gcn_forward.1} parent=31 // pred_fallthru
        _
      // Predicated region
      $region37: #{gcn_forward.1} parent=31 // pred_check
        %p290 = pneg %p102
      $region38: #{gcn_forward.1} parent=31 // pred_check_branch
        %292 = sbr.rel (%p290) target = $region40
      $region39: #{gcn_forward.1} parent=31 // pred_region
        %p293 = scmp.eq.s32.totalorder %s19, 0
        %s294 = scalar_select %p293, %s20, 0
        %s295 = smul.u32 16, %s294
        %p296 = scmp.lt.s32.totalorder %s295, 15
        %s297 = scalar_select %p296, %s295, 15
        %s298 = smul.addr %s297, 4
        %s299 = scalar_lea.vmem %s1, %s298
        %p300 = scmp.eq.s32.totalorder %s19, 0
        %s301 = scalar_select %p300, %s20, 0
        %s302 = smul.u32 16, %s301
      $region40: #{gcn_forward.1} parent=31 // pred_fallthru
        _
    $region32: #{gcn_forward.1} parent=5 // pred_fallthru
      _
    %p303 = scmp.le.s32.totalorder 1, %s12
    %p304 = scmp.lt.s32.totalorder %s12, 5
    %p305 = pnand %p303, %p304
    %p306 = pneg %p305
    // Predicated region
    $region41: #{gcn_forward.1} parent=5 // pred_check
      _
    $region42: #{gcn_forward.1} parent=5 // pred_check_branch
      %308 = sbr.rel (%p305) target = $region44
    $region43: #{gcn_forward.1} parent=5 // pred_region
      %s309 = ssub.s32 %s12, 1
      %p310 = scmp.lt.s32.totalorder %s21, 0
      %s311 = ssub.s32 0, %s21
      %s312 = scalar_select %p310, %s311, %s21
      %s313 = sand.u32 %s312, 1
      %s314 = ssub.s32 0, %s313
      %s315 = scalar_select %p310, %s314, %s313
      %p316 = scmp.ne.s32.totalorder %s315, 0
      %p317 = scmp.lt.s32.totalorder %s315, 0
      %p318 = pnand %p317, %p316
      %p319 = pneg %p318
      %s320 = sadd.s32 %s315, 2
      %s321 = scalar_select %p319, %s320, %s315
      %p322 = scmp.eq.s32.totalorder %s321, 1
      %s323 = scalar_select %p322, %s22, 0
      %s324 = smul.u32 16, %s323
      %p325 = scmp.lt.s32.totalorder %s324, 15
      %s326 = scalar_select %p325, %s324, 15
      %s327 = smul.addr %s326, 4
      %s328 = scalar_lea.vmem %s0, %s327
      %p329 = pneg %p78
      %p330 = pneg %p75
      %p331 = scmp.eq.s32.totalorder %s21, 0
      %s332 = scalar_select %p331, %s22, 0
      %s333 = smul.u32 16, %s332
      %p334 = scmp.lt.s32.totalorder %s333, 15
      %s335 = scalar_select %p334, %s333, 15
      %s336 = smul.addr %s335, 4
      %s337 = scalar_lea.vmem %s1, %s336
      %p338 = pneg %p108
      %p339 = pneg %p105
      %p340 = pneg %p129
      %p341 = pneg %p126
      %p342 = pneg %p150
      %p343 = pneg %p147
      %p344 = pneg %p171
      %p345 = pneg %p168
      %p346 = pneg %p192
      %p347 = pneg %p189
      %p348 = pneg %p222
      %p349 = pneg %p219
      %p350 = scmp.eq.s32.totalorder %s21, 3
      %s351 = scalar_select %p350, %s22, 0
      %s352 = smul.u32 16, %s351
      %p353 = scmp.lt.s32.totalorder %s352, 15
      %s354 = scalar_select %p353, %s352, 15
      %s355 = smul.addr %s354, 8
      %s356 = scalar_lea.vmem %s6, %s355
      %p357 = scmp.lt.s32.totalorder %s21, 0
      %s358 = ssub.s32 0, %s21
      %s359 = scalar_select %p357, %s358, %s21
      %s360 = sand.u32 %s359, 1
      %s361 = ssub.s32 0, %s360
      %s362 = scalar_select %p357, %s361, %s360
      %p363 = scmp.ne.s32.totalorder %s362, 0
      %p364 = scmp.lt.s32.totalorder %s362, 0
      %p365 = pnand %p364, %p363
      %p366 = pneg %p365
      %s367 = sadd.s32 %s362, 2
      %s368 = scalar_select %p366, %s367, %s362
      %p369 = scmp.eq.s32.totalorder %s368, 1
      %s370 = scalar_select %p369, %s22, 0
      %s371 = smul.u32 16, %s370
      %p372 = scmp.lt.s32.totalorder %s371, 15
      %s373 = scalar_select %p372, %s371, 15
      %s374 = smul.addr %s373, 4
      %s375 = scalar_lea.vmem %s0, %s374
      %p376 = scmp.lt.s32.totalorder %s21, 0
      %s377 = ssub.s32 0, %s21
      %s378 = scalar_select %p376, %s377, %s21
      %s379 = sand.u32 %s378, 1
      %s380 = ssub.s32 0, %s379
      %s381 = scalar_select %p376, %s380, %s379
      %p382 = scmp.ne.s32.totalorder %s381, 0
      %p383 = scmp.lt.s32.totalorder %s381, 0
      %p384 = pnand %p383, %p382
      %p385 = pneg %p384
      %s386 = sadd.s32 %s381, 2
      %s387 = scalar_select %p385, %s386, %s381
      %p388 = scmp.eq.s32.totalorder %s387, 1
      %s389 = scalar_select %p388, %s22, 0
      %s390 = smul.u32 16, %s389
      %p391 = scmp.eq.s32.totalorder %s21, 0
      %s392 = scalar_select %p391, %s22, 0
      %s393 = smul.u32 16, %s392
      %p394 = scmp.lt.s32.totalorder %s393, 15
      %s395 = scalar_select %p394, %s393, 15
      %s396 = smul.addr %s395, 4
      %s397 = scalar_lea.vmem %s1, %s396
      %p398 = scmp.eq.s32.totalorder %s21, 0
      %s399 = scalar_select %p398, %s22, 0
      %s400 = smul.u32 16, %s399
      %p401 = scmp.eq.s32.totalorder %s21, 3
      %s402 = scalar_select %p401, %s22, 0
      %s403 = smul.u32 16, %s402
      %p404 = scmp.lt.s32.totalorder %s403, 15
      %s405 = scalar_select %p404, %s403, 15
      %s406 = smul.addr %s405, 8
      %s407 = scalar_lea.vmem %s6, %s406
      %p408 = scmp.eq.s32.totalorder %s21, 3
      %s409 = scalar_select %p408, %s22, 0
      %s410 = smul.u32 16, %s409
      %s412 = smul.u32 %s22, 128
      %p413 = scmp.eq.s32.totalorder %s21, 0
      // Predicated region
      $region45: #{gcn_forward.1} parent=43 // pred_check
        %p414 = pneg %p413
      $region46: #{gcn_forward.1} parent=43 // pred_check_branch
        %416 = sbr.rel (%p414) target = $region48
      $region47: #{gcn_forward.1} parent=43 // pred_region
        %v417 = vld [vmem:[%s397] sm:$0xf]
        %v418 = vld [vmem:[%s397 + $0x4] sm:$0xf]
        %v419 = vld [vmem:[%s397 + $0x8] sm:$0xf]
        %v420 = vld [vmem:[%s397 + $0xc] sm:$0xf]
        %v421 = vld [vmem:[%s397 + $0x10] sm:$0xf]
        %v422 = vld [vmem:[%s397 + $0x14] sm:$0xf]
        %v423 = vld [vmem:[%s397 + $0x18] sm:$0xf]
        %v424 = vld [vmem:[%s397 + $0x1c] sm:$0xf]
        %v425 = vld [vmem:[%s397 + $0x20] sm:$0xf]
        %v426 = vld [vmem:[%s397 + $0x24] sm:$0xf]
        %v427 = vld [vmem:[%s397 + $0x28] sm:$0xf]
        %v428 = vld [vmem:[%s397 + $0x2c] sm:$0xf]
        %v429 = vld [vmem:[%s397 + $0x30] sm:$0xf]
        %v430 = vld [vmem:[%s397 + $0x34] sm:$0xf]
        %v431 = vld [vmem:[%s397 + $0x38] sm:$0xf]
        %v432 = vld [vmem:[%s397 + $0x3c] sm:$0xf]
        %v433 = vld [vmem:[%s2] sm:$0xf]
        %v434 = vld [vmem:[%s2 + $0x4] sm:$0xf]
        %v435 = vld [vmem:[%s2 + $0x8] sm:$0xf]
        %v436 = vld [vmem:[%s2 + $0xc] sm:$0xf]
        %v437 = vld [vmem:[%s2 + $0x10] sm:$0xf]
        %v438 = vld [vmem:[%s2 + $0x14] sm:$0xf]
        %v439 = vld [vmem:[%s2 + $0x18] sm:$0xf]
        %v440 = vld [vmem:[%s2 + $0x1c] sm:$0xf]
        %v441 = vld [vmem:[%s2 + $0x20] sm:$0xf]
        %v442 = vld [vmem:[%s2 + $0x24] sm:$0xf]
        %v443 = vld [vmem:[%s2 + $0x28] sm:$0xf]
        %v444 = vld [vmem:[%s2 + $0x2c] sm:$0xf]
        %v445 = vld [vmem:[%s2 + $0x30] sm:$0xf]
        %v446 = vld [vmem:[%s2 + $0x34] sm:$0xf]
        %v447 = vld [vmem:[%s2 + $0x38] sm:$0xf]
        %v448 = vld [vmem:[%s2 + $0x3c] sm:$0xf]
        %v465 = vunpack.c.l.b16 %v417
        %v466 = vunpack.c.l.b16 %v418
        %v467 = vunpack.c.l.b16 %v419
        %v468 = vunpack.c.l.b16 %v420
        %v469 = vunpack.c.l.b16 %v421
        %v470 = vunpack.c.l.b16 %v422
        %v471 = vunpack.c.l.b16 %v423
        %v472 = vunpack.c.l.b16 %v424
        %v473 = vunpack.c.l.b16 %v425
        %v474 = vunpack.c.l.b16 %v426
        %v475 = vunpack.c.l.b16 %v427
        %v476 = vunpack.c.l.b16 %v428
        %v477 = vunpack.c.l.b16 %v429
        %v478 = vunpack.c.l.b16 %v430
        %v479 = vunpack.c.l.b16 %v431
        %v480 = vunpack.c.l.b16 %v432
        %v481 = vpack.c.b16 %v466, %v465
        %v482 = vpack.c.b16 %v468, %v467
        %v483 = vpack.c.b16 %v470, %v469
        %v484 = vpack.c.b16 %v472, %v471
        %v485 = vpack.c.b16 %v474, %v473
        %v486 = vpack.c.b16 %v476, %v475
        %v487 = vpack.c.b16 %v478, %v477
        %v488 = vpack.c.b16 %v480, %v479
        %v513 = vunpack.c.l.b16 %v433
        %v514 = vunpack.c.l.b16 %v434
        %v515 = vunpack.c.l.b16 %v435
        %v516 = vunpack.c.l.b16 %v436
        %v517 = vunpack.c.l.b16 %v437
        %v518 = vunpack.c.l.b16 %v438
        %v519 = vunpack.c.l.b16 %v439
        %v520 = vunpack.c.l.b16 %v440
        %v521 = vunpack.c.l.b16 %v441
        %v522 = vunpack.c.l.b16 %v442
        %v523 = vunpack.c.l.b16 %v443
        %v524 = vunpack.c.l.b16 %v444
        %v525 = vunpack.c.l.b16 %v445
        %v526 = vunpack.c.l.b16 %v446
        %v527 = vunpack.c.l.b16 %v447
        %v528 = vunpack.c.l.b16 %v448
        %v529 = vpack.c.b16 %v514, %v513
        %v530 = vpack.c.b16 %v516, %v515
        %v531 = vpack.c.b16 %v518, %v517
        %v532 = vpack.c.b16 %v520, %v519
        %v533 = vpack.c.b16 %v522, %v521
        %v534 = vpack.c.b16 %v524, %v523
        %v535 = vpack.c.b16 %v526, %v525
        %v536 = vpack.c.b16 %v528, %v527
        %545 = vmatprep.subr.bf16.mxu0 0
        %546 = vmatpush1.bf16.msra.mxu0 %v536
        %547 = vmatprep.subr.bf16.mxu0 0
        %548 = vmatpush1.bf16.msra.mxu0 %v535
        %549 = vmatprep.subr.bf16.mxu0 0
        %550 = vmatpush1.bf16.msra.mxu0 %v534
        %551 = vmatprep.subr.bf16.mxu0 0
        %552 = vmatpush1.bf16.msra.mxu0 %v533
        %553 = vmatprep.subr.bf16.mxu0 0
        %554 = vmatpush1.bf16.msra.mxu0 %v532
        %555 = vmatprep.subr.bf16.mxu0 0
        %556 = vmatpush1.bf16.msra.mxu0 %v531
        %557 = vmatprep.subr.bf16.mxu0 0
        %558 = vmatpush1.bf16.msra.mxu0 %v530
        %559 = vmatprep.subr.bf16.mxu0 0
        %560 = vmatpush1.bf16.msra.mxu0 %v529
        %561 = vmatprep.subr.bf16.mxu0 0
        %562 = vmatpush2.bf16.msra.mxu0 0
        %563 = vmatprep.subr.bf16.mxu0 0
        %564 = vmatpush2.bf16.msra.mxu0 0
        %565 = vmatprep.subr.bf16.mxu0 0
        %566 = vmatpush2.bf16.msra.mxu0 0
        %567 = vmatprep.subr.bf16.mxu0 0
        %568 = vmatpush2.bf16.msra.mxu0 0
        %569 = vmatprep.subr.bf16.mxu0 0
        %570 = vmatpush2.bf16.msra.mxu0 0
        %571 = vmatprep.subr.bf16.mxu0 0
        %572 = vmatpush2.bf16.msra.mxu0 0
        %573 = vmatprep.subr.bf16.mxu0 0
        %574 = vmatpush2.bf16.msra.mxu0 0
        %575 = vmatprep.subr.bf16.mxu0 0
        %576 = vmatpush2.bf16.msra.mxu0 0
        %577 = vmatprep.mubr.bf16.mxu0 0
        %578 = vmatmul.mubr.bf16.gmra.mxu0 %v481
        %v579 = vpop.f32.mrf.mxu0
        %v580 = vadd.f32 0.0, %v579
        %v581 = vpop.f32.mrf.mxu0
        %v582 = vpop.f32.mrf.mxu0
        %v583 = vadd.f32 0.0, %v582
        %v584 = vpop.f32.mrf.mxu0
        %585 = vmatprep.mubr.bf16.mxu0 0
        %586 = vmatmul.mubr.bf16.gmra.mxu0 %v482
        %v587 = vpop.f32.mrf.mxu0
        %v588 = vadd.f32 0.0, %v587
        %v589 = vpop.f32.mrf.mxu0
        %v590 = vpop.f32.mrf.mxu0
        %v591 = vadd.f32 0.0, %v590
        %v592 = vpop.f32.mrf.mxu0
        %593 = vmatprep.mubr.bf16.mxu0 0
        %594 = vmatmul.mubr.bf16.gmra.mxu0 %v483
        %v595 = vpop.f32.mrf.mxu0
        %v596 = vadd.f32 0.0, %v595
        %v597 = vpop.f32.mrf.mxu0
        %v598 = vpop.f32.mrf.mxu0
        %v599 = vadd.f32 0.0, %v598
        %v600 = vpop.f32.mrf.mxu0
        %601 = vmatprep.mubr.bf16.mxu0 0
        %602 = vmatmul.mubr.bf16.gmra.mxu0 %v484
        %v603 = vpop.f32.mrf.mxu0
        %v604 = vadd.f32 0.0, %v603
        %v605 = vpop.f32.mrf.mxu0
        %v606 = vpop.f32.mrf.mxu0
        %v607 = vadd.f32 0.0, %v606
        %v608 = vpop.f32.mrf.mxu0
        %609 = vmatprep.mubr.bf16.mxu0 0
        %610 = vmatmul.mubr.bf16.gmra.mxu0 %v485
        %v611 = vpop.f32.mrf.mxu0
        %v612 = vadd.f32 0.0, %v611
        %v613 = vpop.f32.mrf.mxu0
        %v614 = vpop.f32.mrf.mxu0
        %v615 = vadd.f32 0.0, %v614
        %v616 = vpop.f32.mrf.mxu0
        %617 = vmatprep.mubr.bf16.mxu0 0
        %618 = vmatmul.mubr.bf16.gmra.mxu0 %v486
        %v619 = vpop.f32.mrf.mxu0
        %v620 = vadd.f32 0.0, %v619
        %v621 = vpop.f32.mrf.mxu0
        %v622 = vpop.f32.mrf.mxu0
        %v623 = vadd.f32 0.0, %v622
        %v624 = vpop.f32.mrf.mxu0
        %625 = vmatprep.mubr.bf16.mxu0 0
        %626 = vmatmul.mubr.bf16.gmra.mxu0 %v487
        %v627 = vpop.f32.mrf.mxu0
        %v628 = vadd.f32 0.0, %v627
        %v629 = vpop.f32.mrf.mxu0
        %v630 = vpop.f32.mrf.mxu0
        %v631 = vadd.f32 0.0, %v630
        %v632 = vpop.f32.mrf.mxu0
        %633 = vmatprep.mubr.bf16.mxu0 0
        %634 = vmatmul.mubr.bf16.gmra.mxu0 %v488
        %v635 = vpop.f32.mrf.mxu0
        %v636 = vadd.f32 0.0, %v635
        %v637 = vpop.f32.mrf.mxu0
        %v638 = vpop.f32.mrf.mxu0
        %v639 = vadd.f32 0.0, %v638
        %v640 = vpop.f32.mrf.mxu0
        %641 = vdwg.mxu0
        %v642 = vpack.c.bf16 %v583, %v580
        %v643 = vpack.c.bf16 %v591, %v588
        %v644 = vpack.c.bf16 %v599, %v596
        %v645 = vpack.c.bf16 %v607, %v604
        %v646 = vpack.c.bf16 %v615, %v612
        %v647 = vpack.c.bf16 %v623, %v620
        %v648 = vpack.c.bf16 %v631, %v628
        %v649 = vpack.c.bf16 %v639, %v636
        %v658 = vunpack.c.l.b16 %v642
        %v659 = vunpack.c.h.b16 %v642
        %v660 = vunpack.c.l.b16 %v643
        %v661 = vunpack.c.h.b16 %v643
        %v662 = vunpack.c.l.b16 %v644
        %v663 = vunpack.c.h.b16 %v644
        %v664 = vunpack.c.l.b16 %v645
        %v665 = vunpack.c.h.b16 %v645
        %v666 = vunpack.c.l.b16 %v646
        %v667 = vunpack.c.h.b16 %v646
        %v668 = vunpack.c.l.b16 %v647
        %v669 = vunpack.c.h.b16 %v647
        %v670 = vunpack.c.l.b16 %v648
        %v671 = vunpack.c.h.b16 %v648
        %v672 = vunpack.c.l.b16 %v649
        %v673 = vunpack.c.h.b16 %v649
        %v674 = vpack.c.b16 %v658, %v658
        %v675 = vpack.c.b16 %v659, %v659
        %v676 = vpack.c.b16 %v660, %v660
        %v677 = vpack.c.b16 %v661, %v661
        %v678 = vpack.c.b16 %v662, %v662
        %v679 = vpack.c.b16 %v663, %v663
        %v680 = vpack.c.b16 %v664, %v664
        %v681 = vpack.c.b16 %v665, %v665
        %v682 = vpack.c.b16 %v666, %v666
        %v683 = vpack.c.b16 %v667, %v667
        %v684 = vpack.c.b16 %v668, %v668
        %v685 = vpack.c.b16 %v669, %v669
        %v686 = vpack.c.b16 %v670, %v670
        %v687 = vpack.c.b16 %v671, %v671
        %v688 = vpack.c.b16 %v672, %v672
        %v689 = vpack.c.b16 %v673, %v673
        %s706 = sshra.s32 %s412, 3
        %s707 = sand.u32 %s412, 7
        %s708 = smul.addr %s706, 4
        %s709 = scalar_lea.vmem [#allocation2], %s708
        %710 = vst [vmem:[%s709] sm:$0xf] %v674
        %711 = vst [vmem:[%s709 + $0x4] sm:$0xf] %v675
        %712 = vst [vmem:[%s709 + $0x8] sm:$0xf] %v676
        %713 = vst [vmem:[%s709 + $0xc] sm:$0xf] %v677
        %714 = vst [vmem:[%s709 + $0x10] sm:$0xf] %v678
        %715 = vst [vmem:[%s709 + $0x14] sm:$0xf] %v679
        %716 = vst [vmem:[%s709 + $0x18] sm:$0xf] %v680
        %717 = vst [vmem:[%s709 + $0x1c] sm:$0xf] %v681
        %718 = vst [vmem:[%s709 + $0x20] sm:$0xf] %v682
        %719 = vst [vmem:[%s709 + $0x24] sm:$0xf] %v683
        %720 = vst [vmem:[%s709 + $0x28] sm:$0xf] %v684
        %721 = vst [vmem:[%s709 + $0x2c] sm:$0xf] %v685
        %722 = vst [vmem:[%s709 + $0x30] sm:$0xf] %v686
        %723 = vst [vmem:[%s709 + $0x34] sm:$0xf] %v687
        %724 = vst [vmem:[%s709 + $0x38] sm:$0xf] %v688
        %725 = vst [vmem:[%s709 + $0x3c] sm:$0xf] %v689
      $region48: #{gcn_forward.1} parent=43 // pred_fallthru
        _
      %p726 = scmp.eq.s32.totalorder %s21, 1
      // Predicated region
      $region49: #{gcn_forward.1} parent=43 // pred_check
        %p727 = pneg %p726
      $region50: #{gcn_forward.1} parent=43 // pred_check_branch
        %729 = sbr.rel (%p727) target = $region52
      $region51: #{gcn_forward.1} parent=43 // pred_region
        %v730 = vld [vmem:[%s375] sm:$0xf]
        %v731 = vld [vmem:[%s375 + $0x4] sm:$0xf]
        %v732 = vld [vmem:[%s375 + $0x8] sm:$0xf]
        %v733 = vld [vmem:[%s375 + $0xc] sm:$0xf]
        %v734 = vld [vmem:[%s375 + $0x10] sm:$0xf]
        %v735 = vld [vmem:[%s375 + $0x14] sm:$0xf]
        %v736 = vld [vmem:[%s375 + $0x18] sm:$0xf]
        %v737 = vld [vmem:[%s375 + $0x1c] sm:$0xf]
        %v738 = vld [vmem:[%s375 + $0x20] sm:$0xf]
        %v739 = vld [vmem:[%s375 + $0x24] sm:$0xf]
        %v740 = vld [vmem:[%s375 + $0x28] sm:$0xf]
        %v741 = vld [vmem:[%s375 + $0x2c] sm:$0xf]
        %v742 = vld [vmem:[%s375 + $0x30] sm:$0xf]
        %v743 = vld [vmem:[%s375 + $0x34] sm:$0xf]
        %v744 = vld [vmem:[%s375 + $0x38] sm:$0xf]
        %v745 = vld [vmem:[%s375 + $0x3c] sm:$0xf]
        %v746 = vld [vmem:[#allocation2] sm:$0xf]
        %v747 = vld [vmem:[#allocation2 + $0x4] sm:$0xf]
        %v748 = vld [vmem:[#allocation2 + $0x8] sm:$0xf]
        %v749 = vld [vmem:[#allocation2 + $0xc] sm:$0xf]
        %v750 = vld [vmem:[#allocation2 + $0x10] sm:$0xf]
        %v751 = vld [vmem:[#allocation2 + $0x14] sm:$0xf]
        %v752 = vld [vmem:[#allocation2 + $0x18] sm:$0xf]
        %v753 = vld [vmem:[#allocation2 + $0x1c] sm:$0xf]
        %v754 = vld [vmem:[#allocation2 + $0x20] sm:$0xf]
        %v755 = vld [vmem:[#allocation2 + $0x24] sm:$0xf]
        %v756 = vld [vmem:[#allocation2 + $0x28] sm:$0xf]
        %v757 = vld [vmem:[#allocation2 + $0x2c] sm:$0xf]
        %v758 = vld [vmem:[#allocation2 + $0x30] sm:$0xf]
        %v759 = vld [vmem:[#allocation2 + $0x34] sm:$0xf]
        %v760 = vld [vmem:[#allocation2 + $0x38] sm:$0xf]
        %v761 = vld [vmem:[#allocation2 + $0x3c] sm:$0xf]
        %v762 = vld [vmem:[%s3] sm:$0x1]
        %v764 = vlaneseq
        %v765 = vshrl.u32 %v764, 7
        %v766 = vsub.s32 0, %v765
        %v767 = vrot.slane %v762, %v766
        %v785 = vunpack.c.l.b16 %v730
        %v786 = vunpack.c.l.b16 %v731
        %v787 = vunpack.c.l.b16 %v732
        %v788 = vunpack.c.l.b16 %v733
        %v789 = vunpack.c.l.b16 %v734
        %v790 = vunpack.c.l.b16 %v735
        %v791 = vunpack.c.l.b16 %v736
        %v792 = vunpack.c.l.b16 %v737
        %v793 = vunpack.c.l.b16 %v738
        %v794 = vunpack.c.l.b16 %v739
        %v795 = vunpack.c.l.b16 %v740
        %v796 = vunpack.c.l.b16 %v741
        %v797 = vunpack.c.l.b16 %v742
        %v798 = vunpack.c.l.b16 %v743
        %v799 = vunpack.c.l.b16 %v744
        %v800 = vunpack.c.l.b16 %v745
        %v801 = vpack.c.b16 %v786, %v785
        %v802 = vpack.c.b16 %v788, %v787
        %v803 = vpack.c.b16 %v790, %v789
        %v804 = vpack.c.b16 %v792, %v791
        %v805 = vpack.c.b16 %v794, %v793
        %v806 = vpack.c.b16 %v796, %v795
        %v807 = vpack.c.b16 %v798, %v797
        %v808 = vpack.c.b16 %v800, %v799
        %v833 = vunpack.c.l.b16 %v746
        %v834 = vunpack.c.l.b16 %v747
        %v835 = vunpack.c.l.b16 %v748
        %v836 = vunpack.c.l.b16 %v749
        %v837 = vunpack.c.l.b16 %v750
        %v838 = vunpack.c.l.b16 %v751
        %v839 = vunpack.c.l.b16 %v752
        %v840 = vunpack.c.l.b16 %v753
        %v841 = vunpack.c.l.b16 %v754
        %v842 = vunpack.c.l.b16 %v755
        %v843 = vunpack.c.l.b16 %v756
        %v844 = vunpack.c.l.b16 %v757
        %v845 = vunpack.c.l.b16 %v758
        %v846 = vunpack.c.l.b16 %v759
        %v847 = vunpack.c.l.b16 %v760
        %v848 = vunpack.c.l.b16 %v761
        %v849 = vpack.c.b16 %v834, %v833
        %v850 = vpack.c.b16 %v836, %v835
        %v851 = vpack.c.b16 %v838, %v837
        %v852 = vpack.c.b16 %v840, %v839
        %v853 = vpack.c.b16 %v842, %v841
        %v854 = vpack.c.b16 %v844, %v843
        %v855 = vpack.c.b16 %v846, %v845
        %v856 = vpack.c.b16 %v848, %v847
        %865 = vmatprep.subr.bf16.mxu0 0
        %866 = vmatpush1.bf16.msra.mxu0 %v856
        %867 = vmatprep.subr.bf16.mxu0 0
        %868 = vmatpush1.bf16.msra.mxu0 %v855
        %869 = vmatprep.subr.bf16.mxu0 0
        %870 = vmatpush1.bf16.msra.mxu0 %v854
        %871 = vmatprep.subr.bf16.mxu0 0
        %872 = vmatpush1.bf16.msra.mxu0 %v853
        %873 = vmatprep.subr.bf16.mxu0 0
        %874 = vmatpush1.bf16.msra.mxu0 %v852
        %875 = vmatprep.subr.bf16.mxu0 0
        %876 = vmatpush1.bf16.msra.mxu0 %v851
        %877 = vmatprep.subr.bf16.mxu0 0
        %878 = vmatpush1.bf16.msra.mxu0 %v850
        %879 = vmatprep.subr.bf16.mxu0 0
        %880 = vmatpush1.bf16.msra.mxu0 %v849
        %881 = vmatprep.subr.bf16.mxu0 0
        %882 = vmatpush2.bf16.msra.mxu0 0
        %883 = vmatprep.subr.bf16.mxu0 0
        %884 = vmatpush2.bf16.msra.mxu0 0
        %885 = vmatprep.subr.bf16.mxu0 0
        %886 = vmatpush2.bf16.msra.mxu0 0
        %887 = vmatprep.subr.bf16.mxu0 0
        %888 = vmatpush2.bf16.msra.mxu0 0
        %889 = vmatprep.subr.bf16.mxu0 0
        %890 = vmatpush2.bf16.msra.mxu0 0
        %891 = vmatprep.subr.bf16.mxu0 0
        %892 = vmatpush2.bf16.msra.mxu0 0
        %893 = vmatprep.subr.bf16.mxu0 0
        %894 = vmatpush2.bf16.msra.mxu0 0
        %895 = vmatprep.subr.bf16.mxu0 0
        %896 = vmatpush2.bf16.msra.mxu0 0
        %897 = vmatprep.mubr.bf16.mxu0 0
        %898 = vmatmul.mubr.bf16.gmra.mxu0 %v801
        %v899 = vpop.f32.mrf.mxu0
        %v900 = vadd.f32 %v767, %v899
        %v901 = vpop.f32.mrf.mxu0
        %v902 = vpop.f32.mrf.mxu0
        %v903 = vadd.f32 %v767, %v902
        %v904 = vpop.f32.mrf.mxu0
        %905 = vmatprep.mubr.bf16.mxu0 0
        %906 = vmatmul.mubr.bf16.gmra.mxu0 %v802
        %v907 = vpop.f32.mrf.mxu0
        %v908 = vadd.f32 %v767, %v907
        %v909 = vpop.f32.mrf.mxu0
        %v910 = vpop.f32.mrf.mxu0
        %v911 = vadd.f32 %v767, %v910
        %v912 = vpop.f32.mrf.mxu0
        %913 = vmatprep.mubr.bf16.mxu0 0
        %914 = vmatmul.mubr.bf16.gmra.mxu0 %v803
        %v915 = vpop.f32.mrf.mxu0
        %v916 = vadd.f32 %v767, %v915
        %v917 = vpop.f32.mrf.mxu0
        %v918 = vpop.f32.mrf.mxu0
        %v919 = vadd.f32 %v767, %v918
        %v920 = vpop.f32.mrf.mxu0
        %921 = vmatprep.mubr.bf16.mxu0 0
        %922 = vmatmul.mubr.bf16.gmra.mxu0 %v804
        %v923 = vpop.f32.mrf.mxu0
        %v924 = vadd.f32 %v767, %v923
        %v925 = vpop.f32.mrf.mxu0
        %v926 = vpop.f32.mrf.mxu0
        %v927 = vadd.f32 %v767, %v926
        %v928 = vpop.f32.mrf.mxu0
        %929 = vmatprep.mubr.bf16.mxu0 0
        %930 = vmatmul.mubr.bf16.gmra.mxu0 %v805
        %v931 = vpop.f32.mrf.mxu0
        %v932 = vadd.f32 %v767, %v931
        %v933 = vpop.f32.mrf.mxu0
        %v934 = vpop.f32.mrf.mxu0
        %v935 = vadd.f32 %v767, %v934
        %v936 = vpop.f32.mrf.mxu0
        %937 = vmatprep.mubr.bf16.mxu0 0
        %938 = vmatmul.mubr.bf16.gmra.mxu0 %v806
        %v939 = vpop.f32.mrf.mxu0
        %v940 = vadd.f32 %v767, %v939
        %v941 = vpop.f32.mrf.mxu0
        %v942 = vpop.f32.mrf.mxu0
        %v943 = vadd.f32 %v767, %v942
        %v944 = vpop.f32.mrf.mxu0
        %945 = vmatprep.mubr.bf16.mxu0 0
        %946 = vmatmul.mubr.bf16.gmra.mxu0 %v807
        %v947 = vpop.f32.mrf.mxu0
        %v948 = vadd.f32 %v767, %v947
        %v949 = vpop.f32.mrf.mxu0
        %v950 = vpop.f32.mrf.mxu0
        %v951 = vadd.f32 %v767, %v950
        %v952 = vpop.f32.mrf.mxu0
        %953 = vmatprep.mubr.bf16.mxu0 0
        %954 = vmatmul.mubr.bf16.gmra.mxu0 %v808
        %v955 = vpop.f32.mrf.mxu0
        %v956 = vadd.f32 %v767, %v955
        %v957 = vpop.f32.mrf.mxu0
        %v958 = vpop.f32.mrf.mxu0
        %v959 = vadd.f32 %v767, %v958
        %v960 = vpop.f32.mrf.mxu0
        %961 = vdwg.mxu0
        %v962 = vmax.f32 %v900, 0.0
        %v963 = vmax.f32 %v903, 0.0
        %v964 = vmax.f32 %v908, 0.0
        %v965 = vmax.f32 %v911, 0.0
        %v966 = vmax.f32 %v916, 0.0
        %v967 = vmax.f32 %v919, 0.0
        %v968 = vmax.f32 %v924, 0.0
        %v969 = vmax.f32 %v927, 0.0
        %v970 = vmax.f32 %v932, 0.0
        %v971 = vmax.f32 %v935, 0.0
        %v972 = vmax.f32 %v940, 0.0
        %v973 = vmax.f32 %v943, 0.0
        %v974 = vmax.f32 %v948, 0.0
        %v975 = vmax.f32 %v951, 0.0
        %v976 = vmax.f32 %v956, 0.0
        %v977 = vmax.f32 %v959, 0.0
        %v978 = vpack.c.bf16 %v963, %v962
        %v979 = vpack.c.bf16 %v965, %v964
        %v980 = vpack.c.bf16 %v967, %v966
        %v981 = vpack.c.bf16 %v969, %v968
        %v982 = vpack.c.bf16 %v971, %v970
        %v983 = vpack.c.bf16 %v973, %v972
        %v984 = vpack.c.bf16 %v975, %v974
        %v985 = vpack.c.bf16 %v977, %v976
        %v994 = vunpack.c.l.b16 %v978
        %v995 = vunpack.c.h.b16 %v978
        %v996 = vunpack.c.l.b16 %v979
        %v997 = vunpack.c.h.b16 %v979
        %v998 = vunpack.c.l.b16 %v980
        %v999 = vunpack.c.h.b16 %v980
        %v1000 = vunpack.c.l.b16 %v981
        %v1001 = vunpack.c.h.b16 %v981
        %v1002 = vunpack.c.l.b16 %v982
        %v1003 = vunpack.c.h.b16 %v982
        %v1004 = vunpack.c.l.b16 %v983
        %v1005 = vunpack.c.h.b16 %v983
        %v1006 = vunpack.c.l.b16 %v984
        %v1007 = vunpack.c.h.b16 %v984
        %v1008 = vunpack.c.l.b16 %v985
        %v1009 = vunpack.c.h.b16 %v985
        %v1010 = vpack.c.b16 %v994, %v994
        %v1011 = vpack.c.b16 %v995, %v995
        %v1012 = vpack.c.b16 %v996, %v996
        %v1013 = vpack.c.b16 %v997, %v997
        %v1014 = vpack.c.b16 %v998, %v998
        %v1015 = vpack.c.b16 %v999, %v999
        %v1016 = vpack.c.b16 %v1000, %v1000
        %v1017 = vpack.c.b16 %v1001, %v1001
        %v1018 = vpack.c.b16 %v1002, %v1002
        %v1019 = vpack.c.b16 %v1003, %v1003
        %v1020 = vpack.c.b16 %v1004, %v1004
        %v1021 = vpack.c.b16 %v1005, %v1005
        %v1022 = vpack.c.b16 %v1006, %v1006
        %v1023 = vpack.c.b16 %v1007, %v1007
        %v1024 = vpack.c.b16 %v1008, %v1008
        %v1025 = vpack.c.b16 %v1009, %v1009
        %s1042 = sshra.s32 %s412, 3
        %s1043 = sand.u32 %s412, 7
        %s1044 = smul.addr %s1042, 4
        %s1045 = scalar_lea.vmem [#allocation3], %s1044
        %1046 = vst [vmem:[%s1045] sm:$0xf] %v1010
        %1047 = vst [vmem:[%s1045 + $0x4] sm:$0xf] %v1011
        %1048 = vst [vmem:[%s1045 + $0x8] sm:$0xf] %v1012
        %1049 = vst [vmem:[%s1045 + $0xc] sm:$0xf] %v1013
        %1050 = vst [vmem:[%s1045 + $0x10] sm:$0xf] %v1014
        %1051 = vst [vmem:[%s1045 + $0x14] sm:$0xf] %v1015
        %1052 = vst [vmem:[%s1045 + $0x18] sm:$0xf] %v1016
        %1053 = vst [vmem:[%s1045 + $0x1c] sm:$0xf] %v1017
        %1054 = vst [vmem:[%s1045 + $0x20] sm:$0xf] %v1018
        %1055 = vst [vmem:[%s1045 + $0x24] sm:$0xf] %v1019
        %1056 = vst [vmem:[%s1045 + $0x28] sm:$0xf] %v1020
        %1057 = vst [vmem:[%s1045 + $0x2c] sm:$0xf] %v1021
        %1058 = vst [vmem:[%s1045 + $0x30] sm:$0xf] %v1022
        %1059 = vst [vmem:[%s1045 + $0x34] sm:$0xf] %v1023
        %1060 = vst [vmem:[%s1045 + $0x38] sm:$0xf] %v1024
        %1061 = vst [vmem:[%s1045 + $0x3c] sm:$0xf] %v1025
      $region52: #{gcn_forward.1} parent=43 // pred_fallthru
        _
      %p1062 = scmp.eq.s32.totalorder %s21, 2
      // Predicated region
      $region53: #{gcn_forward.1} parent=43 // pred_check
        %p1063 = pneg %p1062
      $region54: #{gcn_forward.1} parent=43 // pred_check_branch
        %1065 = sbr.rel (%p1063) target = $region56
      $region55: #{gcn_forward.1} parent=43 // pred_region
        %s1066 = sshra.s32 %s412, 3
        %s1067 = sand.u32 %s412, 7
        %s1068 = smul.addr %s1066, 4
        %s1069 = scalar_lea.vmem [#allocation3], %s1068
        %v1070 = vld [vmem:[%s1069] sm:$0xf]
        %v1071 = vld [vmem:[%s1069 + $0x4] sm:$0xf]
        %v1072 = vld [vmem:[%s1069 + $0x8] sm:$0xf]
        %v1073 = vld [vmem:[%s1069 + $0xc] sm:$0xf]
        %v1074 = vld [vmem:[%s1069 + $0x10] sm:$0xf]
        %v1075 = vld [vmem:[%s1069 + $0x14] sm:$0xf]
        %v1076 = vld [vmem:[%s1069 + $0x18] sm:$0xf]
        %v1077 = vld [vmem:[%s1069 + $0x1c] sm:$0xf]
        %v1078 = vld [vmem:[%s1069 + $0x20] sm:$0xf]
        %v1079 = vld [vmem:[%s1069 + $0x24] sm:$0xf]
        %v1080 = vld [vmem:[%s1069 + $0x28] sm:$0xf]
        %v1081 = vld [vmem:[%s1069 + $0x2c] sm:$0xf]
        %v1082 = vld [vmem:[%s1069 + $0x30] sm:$0xf]
        %v1083 = vld [vmem:[%s1069 + $0x34] sm:$0xf]
        %v1084 = vld [vmem:[%s1069 + $0x38] sm:$0xf]
        %v1085 = vld [vmem:[%s1069 + $0x3c] sm:$0xf]
        %v1086 = vld [vmem:[%s4] sm:$0xf]
        %v1087 = vld [vmem:[%s4 + $0x4] sm:$0xf]
        %v1088 = vld [vmem:[%s4 + $0x8] sm:$0xf]
        %v1089 = vld [vmem:[%s4 + $0xc] sm:$0xf]
        %v1090 = vld [vmem:[%s4 + $0x10] sm:$0xf]
        %v1091 = vld [vmem:[%s4 + $0x14] sm:$0xf]
        %v1092 = vld [vmem:[%s4 + $0x18] sm:$0xf]
        %v1093 = vld [vmem:[%s4 + $0x1c] sm:$0xf]
        %v1094 = vld [vmem:[%s4 + $0x20] sm:$0xf]
        %v1095 = vld [vmem:[%s4 + $0x24] sm:$0xf]
        %v1096 = vld [vmem:[%s4 + $0x28] sm:$0xf]
        %v1097 = vld [vmem:[%s4 + $0x2c] sm:$0xf]
        %v1098 = vld [vmem:[%s4 + $0x30] sm:$0xf]
        %v1099 = vld [vmem:[%s4 + $0x34] sm:$0xf]
        %v1100 = vld [vmem:[%s4 + $0x38] sm:$0xf]
        %v1101 = vld [vmem:[%s4 + $0x3c] sm:$0xf]
        %v1118 = vunpack.c.l.b16 %v1070
        %v1119 = vunpack.c.l.b16 %v1071
        %v1120 = vunpack.c.l.b16 %v1072
        %v1121 = vunpack.c.l.b16 %v1073
        %v1122 = vunpack.c.l.b16 %v1074
        %v1123 = vunpack.c.l.b16 %v1075
        %v1124 = vunpack.c.l.b16 %v1076
        %v1125 = vunpack.c.l.b16 %v1077
        %v1126 = vunpack.c.l.b16 %v1078
        %v1127 = vunpack.c.l.b16 %v1079
        %v1128 = vunpack.c.l.b16 %v1080
        %v1129 = vunpack.c.l.b16 %v1081
        %v1130 = vunpack.c.l.b16 %v1082
        %v1131 = vunpack.c.l.b16 %v1083
        %v1132 = vunpack.c.l.b16 %v1084
        %v1133 = vunpack.c.l.b16 %v1085
        %v1134 = vpack.c.b16 %v1119, %v1118
        %v1135 = vpack.c.b16 %v1121, %v1120
        %v1136 = vpack.c.b16 %v1123, %v1122
        %v1137 = vpack.c.b16 %v1125, %v1124
        %v1138 = vpack.c.b16 %v1127, %v1126
        %v1139 = vpack.c.b16 %v1129, %v1128
        %v1140 = vpack.c.b16 %v1131, %v1130
        %v1141 = vpack.c.b16 %v1133, %v1132
        %v1166 = vunpack.c.l.b16 %v1086
        %v1167 = vunpack.c.l.b16 %v1087
        %v1168 = vunpack.c.l.b16 %v1088
        %v1169 = vunpack.c.l.b16 %v1089
        %v1170 = vunpack.c.l.b16 %v1090
        %v1171 = vunpack.c.l.b16 %v1091
        %v1172 = vunpack.c.l.b16 %v1092
        %v1173 = vunpack.c.l.b16 %v1093
        %v1174 = vunpack.c.l.b16 %v1094
        %v1175 = vunpack.c.l.b16 %v1095
        %v1176 = vunpack.c.l.b16 %v1096
        %v1177 = vunpack.c.l.b16 %v1097
        %v1178 = vunpack.c.l.b16 %v1098
        %v1179 = vunpack.c.l.b16 %v1099
        %v1180 = vunpack.c.l.b16 %v1100
        %v1181 = vunpack.c.l.b16 %v1101
        %v1182 = vpack.c.b16 %v1167, %v1166
        %v1183 = vpack.c.b16 %v1169, %v1168
        %v1184 = vpack.c.b16 %v1171, %v1170
        %v1185 = vpack.c.b16 %v1173, %v1172
        %v1186 = vpack.c.b16 %v1175, %v1174
        %v1187 = vpack.c.b16 %v1177, %v1176
        %v1188 = vpack.c.b16 %v1179, %v1178
        %v1189 = vpack.c.b16 %v1181, %v1180
        %1198 = vmatprep.subr.bf16.mxu0 0
        %1199 = vmatpush1.bf16.msra.mxu0 %v1189
        %1200 = vmatprep.subr.bf16.mxu0 0
        %1201 = vmatpush1.bf16.msra.mxu0 %v1188
        %1202 = vmatprep.subr.bf16.mxu0 0
        %1203 = vmatpush1.bf16.msra.mxu0 %v1187
        %1204 = vmatprep.subr.bf16.mxu0 0
        %1205 = vmatpush1.bf16.msra.mxu0 %v1186
        %1206 = vmatprep.subr.bf16.mxu0 0
        %1207 = vmatpush1.bf16.msra.mxu0 %v1185
        %1208 = vmatprep.subr.bf16.mxu0 0
        %1209 = vmatpush1.bf16.msra.mxu0 %v1184
        %1210 = vmatprep.subr.bf16.mxu0 0
        %1211 = vmatpush1.bf16.msra.mxu0 %v1183
        %1212 = vmatprep.subr.bf16.mxu0 0
        %1213 = vmatpush1.bf16.msra.mxu0 %v1182
        %1214 = vmatprep.subr.bf16.mxu0 0
        %1215 = vmatpush2.bf16.msra.mxu0 0
        %1216 = vmatprep.subr.bf16.mxu0 0
        %1217 = vmatpush2.bf16.msra.mxu0 0
        %1218 = vmatprep.subr.bf16.mxu0 0
        %1219 = vmatpush2.bf16.msra.mxu0 0
        %1220 = vmatprep.subr.bf16.mxu0 0
        %1221 = vmatpush2.bf16.msra.mxu0 0
        %1222 = vmatprep.subr.bf16.mxu0 0
        %1223 = vmatpush2.bf16.msra.mxu0 0
        %1224 = vmatprep.subr.bf16.mxu0 0
        %1225 = vmatpush2.bf16.msra.mxu0 0
        %1226 = vmatprep.subr.bf16.mxu0 0
        %1227 = vmatpush2.bf16.msra.mxu0 0
        %1228 = vmatprep.subr.bf16.mxu0 0
        %1229 = vmatpush2.bf16.msra.mxu0 0
        %1230 = vmatprep.mubr.bf16.mxu0 0
        %1231 = vmatmul.mubr.bf16.gmra.mxu0 %v1134
        %v1232 = vpop.f32.mrf.mxu0
        %v1233 = vadd.f32 0.0, %v1232
        %v1234 = vpop.f32.mrf.mxu0
        %v1235 = vpop.f32.mrf.mxu0
        %v1236 = vadd.f32 0.0, %v1235
        %v1237 = vpop.f32.mrf.mxu0
        %1238 = vmatprep.mubr.bf16.mxu0 0
        %1239 = vmatmul.mubr.bf16.gmra.mxu0 %v1135
        %v1240 = vpop.f32.mrf.mxu0
        %v1241 = vadd.f32 0.0, %v1240
        %v1242 = vpop.f32.mrf.mxu0
        %v1243 = vpop.f32.mrf.mxu0
        %v1244 = vadd.f32 0.0, %v1243
        %v1245 = vpop.f32.mrf.mxu0
        %1246 = vmatprep.mubr.bf16.mxu0 0
        %1247 = vmatmul.mubr.bf16.gmra.mxu0 %v1136
        %v1248 = vpop.f32.mrf.mxu0
        %v1249 = vadd.f32 0.0, %v1248
        %v1250 = vpop.f32.mrf.mxu0
        %v1251 = vpop.f32.mrf.mxu0
        %v1252 = vadd.f32 0.0, %v1251
        %v1253 = vpop.f32.mrf.mxu0
        %1254 = vmatprep.mubr.bf16.mxu0 0
        %1255 = vmatmul.mubr.bf16.gmra.mxu0 %v1137
        %v1256 = vpop.f32.mrf.mxu0
        %v1257 = vadd.f32 0.0, %v1256
        %v1258 = vpop.f32.mrf.mxu0
        %v1259 = vpop.f32.mrf.mxu0
        %v1260 = vadd.f32 0.0, %v1259
        %v1261 = vpop.f32.mrf.mxu0
        %1262 = vmatprep.mubr.bf16.mxu0 0
        %1263 = vmatmul.mubr.bf16.gmra.mxu0 %v1138
        %v1264 = vpop.f32.mrf.mxu0
        %v1265 = vadd.f32 0.0, %v1264
        %v1266 = vpop.f32.mrf.mxu0
        %v1267 = vpop.f32.mrf.mxu0
        %v1268 = vadd.f32 0.0, %v1267
        %v1269 = vpop.f32.mrf.mxu0
        %1270 = vmatprep.mubr.bf16.mxu0 0
        %1271 = vmatmul.mubr.bf16.gmra.mxu0 %v1139
        %v1272 = vpop.f32.mrf.mxu0
        %v1273 = vadd.f32 0.0, %v1272
        %v1274 = vpop.f32.mrf.mxu0
        %v1275 = vpop.f32.mrf.mxu0
        %v1276 = vadd.f32 0.0, %v1275
        %v1277 = vpop.f32.mrf.mxu0
        %1278 = vmatprep.mubr.bf16.mxu0 0
        %1279 = vmatmul.mubr.bf16.gmra.mxu0 %v1140
        %v1280 = vpop.f32.mrf.mxu0
        %v1281 = vadd.f32 0.0, %v1280
        %v1282 = vpop.f32.mrf.mxu0
        %v1283 = vpop.f32.mrf.mxu0
        %v1284 = vadd.f32 0.0, %v1283
        %v1285 = vpop.f32.mrf.mxu0
        %1286 = vmatprep.mubr.bf16.mxu0 0
        %1287 = vmatmul.mubr.bf16.gmra.mxu0 %v1141
        %v1288 = vpop.f32.mrf.mxu0
        %v1289 = vadd.f32 0.0, %v1288
        %v1290 = vpop.f32.mrf.mxu0
        %v1291 = vpop.f32.mrf.mxu0
        %v1292 = vadd.f32 0.0, %v1291
        %v1293 = vpop.f32.mrf.mxu0
        %1294 = vdwg.mxu0
        %v1295 = vpack.c.bf16 %v1236, %v1233
        %v1296 = vpack.c.bf16 %v1244, %v1241
        %v1297 = vpack.c.bf16 %v1252, %v1249
        %v1298 = vpack.c.bf16 %v1260, %v1257
        %v1299 = vpack.c.bf16 %v1268, %v1265
        %v1300 = vpack.c.bf16 %v1276, %v1273
        %v1301 = vpack.c.bf16 %v1284, %v1281
        %v1302 = vpack.c.bf16 %v1292, %v1289
        %v1311 = vunpack.c.l.b16 %v1295
        %v1312 = vunpack.c.h.b16 %v1295
        %v1313 = vunpack.c.l.b16 %v1296
        %v1314 = vunpack.c.h.b16 %v1296
        %v1315 = vunpack.c.l.b16 %v1297
        %v1316 = vunpack.c.h.b16 %v1297
        %v1317 = vunpack.c.l.b16 %v1298
        %v1318 = vunpack.c.h.b16 %v1298
        %v1319 = vunpack.c.l.b16 %v1299
        %v1320 = vunpack.c.h.b16 %v1299
        %v1321 = vunpack.c.l.b16 %v1300
        %v1322 = vunpack.c.h.b16 %v1300
        %v1323 = vunpack.c.l.b16 %v1301
        %v1324 = vunpack.c.h.b16 %v1301
        %v1325 = vunpack.c.l.b16 %v1302
        %v1326 = vunpack.c.h.b16 %v1302
        %v1327 = vpack.c.b16 %v1311, %v1311
        %v1328 = vpack.c.b16 %v1312, %v1312
        %v1329 = vpack.c.b16 %v1313, %v1313
        %v1330 = vpack.c.b16 %v1314, %v1314
        %v1331 = vpack.c.b16 %v1315, %v1315
        %v1332 = vpack.c.b16 %v1316, %v1316
        %v1333 = vpack.c.b16 %v1317, %v1317
        %v1334 = vpack.c.b16 %v1318, %v1318
        %v1335 = vpack.c.b16 %v1319, %v1319
        %v1336 = vpack.c.b16 %v1320, %v1320
        %v1337 = vpack.c.b16 %v1321, %v1321
        %v1338 = vpack.c.b16 %v1322, %v1322
        %v1339 = vpack.c.b16 %v1323, %v1323
        %v1340 = vpack.c.b16 %v1324, %v1324
        %v1341 = vpack.c.b16 %v1325, %v1325
        %v1342 = vpack.c.b16 %v1326, %v1326
        %s1359 = smul.addr %s1066, 4
        %s1360 = scalar_lea.vmem [#allocation4], %s1359
        %1361 = vst [vmem:[%s1360] sm:$0xf] %v1327
        %1362 = vst [vmem:[%s1360 + $0x4] sm:$0xf] %v1328
        %1363 = vst [vmem:[%s1360 + $0x8] sm:$0xf] %v1329
        %1364 = vst [vmem:[%s1360 + $0xc] sm:$0xf] %v1330
        %1365 = vst [vmem:[%s1360 + $0x10] sm:$0xf] %v1331
        %1366 = vst [vmem:[%s1360 + $0x14] sm:$0xf] %v1332
        %1367 = vst [vmem:[%s1360 + $0x18] sm:$0xf] %v1333
        %1368 = vst [vmem:[%s1360 + $0x1c] sm:$0xf] %v1334
        %1369 = vst [vmem:[%s1360 + $0x20] sm:$0xf] %v1335
        %1370 = vst [vmem:[%s1360 + $0x24] sm:$0xf] %v1336
        %1371 = vst [vmem:[%s1360 + $0x28] sm:$0xf] %v1337
        %1372 = vst [vmem:[%s1360 + $0x2c] sm:$0xf] %v1338
        %1373 = vst [vmem:[%s1360 + $0x30] sm:$0xf] %v1339
        %1374 = vst [vmem:[%s1360 + $0x34] sm:$0xf] %v1340
        %1375 = vst [vmem:[%s1360 + $0x38] sm:$0xf] %v1341
        %1376 = vst [vmem:[%s1360 + $0x3c] sm:$0xf] %v1342
      $region56: #{gcn_forward.1} parent=43 // pred_fallthru
        _
      %p1377 = scmp.eq.s32.totalorder %s21, 3
      // Predicated region
      $region57: #{gcn_forward.1} parent=43 // pred_check
        %p1378 = pneg %p1377
      $region58: #{gcn_forward.1} parent=43 // pred_check_branch
        %1380 = sbr.rel (%p1378) target = $region60
      $region59: #{gcn_forward.1} parent=43 // pred_region
        %v1381 = vld [vmem:[%s375] sm:$0xf]
        %v1382 = vld [vmem:[%s375 + $0x4] sm:$0xf]
        %v1383 = vld [vmem:[%s375 + $0x8] sm:$0xf]
        %v1384 = vld [vmem:[%s375 + $0xc] sm:$0xf]
        %v1385 = vld [vmem:[%s375 + $0x10] sm:$0xf]
        %v1386 = vld [vmem:[%s375 + $0x14] sm:$0xf]
        %v1387 = vld [vmem:[%s375 + $0x18] sm:$0xf]
        %v1388 = vld [vmem:[%s375 + $0x1c] sm:$0xf]
        %v1389 = vld [vmem:[%s375 + $0x20] sm:$0xf]
        %v1390 = vld [vmem:[%s375 + $0x24] sm:$0xf]
        %v1391 = vld [vmem:[%s375 + $0x28] sm:$0xf]
        %v1392 = vld [vmem:[%s375 + $0x2c] sm:$0xf]
        %v1393 = vld [vmem:[%s375 + $0x30] sm:$0xf]
        %v1394 = vld [vmem:[%s375 + $0x34] sm:$0xf]
        %v1395 = vld [vmem:[%s375 + $0x38] sm:$0xf]
        %v1396 = vld [vmem:[%s375 + $0x3c] sm:$0xf]
        %v1397 = vld [vmem:[#allocation4] sm:$0xf]
        %v1398 = vld [vmem:[#allocation4 + $0x4] sm:$0xf]
        %v1399 = vld [vmem:[#allocation4 + $0x8] sm:$0xf]
        %v1400 = vld [vmem:[#allocation4 + $0xc] sm:$0xf]
        %v1401 = vld [vmem:[#allocation4 + $0x10] sm:$0xf]
        %v1402 = vld [vmem:[#allocation4 + $0x14] sm:$0xf]
        %v1403 = vld [vmem:[#allocation4 + $0x18] sm:$0xf]
        %v1404 = vld [vmem:[#allocation4 + $0x1c] sm:$0xf]
        %v1405 = vld [vmem:[#allocation4 + $0x20] sm:$0xf]
        %v1406 = vld [vmem:[#allocation4 + $0x24] sm:$0xf]
        %v1407 = vld [vmem:[#allocation4 + $0x28] sm:$0xf]
        %v1408 = vld [vmem:[#allocation4 + $0x2c] sm:$0xf]
        %v1409 = vld [vmem:[#allocation4 + $0x30] sm:$0xf]
        %v1410 = vld [vmem:[#allocation4 + $0x34] sm:$0xf]
        %v1411 = vld [vmem:[#allocation4 + $0x38] sm:$0xf]
        %v1412 = vld [vmem:[#allocation4 + $0x3c] sm:$0xf]
        %v1413 = vld [vmem:[%s5] sm:$0x1]
        %v1415 = vlaneseq
        %v1416 = vshrl.u32 %v1415, 7
        %v1417 = vsub.s32 0, %v1416
        %v1418 = vrot.slane %v1413, %v1417
        %v1436 = vunpack.c.l.b16 %v1381
        %v1437 = vunpack.c.l.b16 %v1382
        %v1438 = vunpack.c.l.b16 %v1383
        %v1439 = vunpack.c.l.b16 %v1384
        %v1440 = vunpack.c.l.b16 %v1385
        %v1441 = vunpack.c.l.b16 %v1386
        %v1442 = vunpack.c.l.b16 %v1387
        %v1443 = vunpack.c.l.b16 %v1388
        %v1444 = vunpack.c.l.b16 %v1389
        %v1445 = vunpack.c.l.b16 %v1390
        %v1446 = vunpack.c.l.b16 %v1391
        %v1447 = vunpack.c.l.b16 %v1392
        %v1448 = vunpack.c.l.b16 %v1393
        %v1449 = vunpack.c.l.b16 %v1394
        %v1450 = vunpack.c.l.b16 %v1395
        %v1451 = vunpack.c.l.b16 %v1396
        %v1452 = vpack.c.b16 %v1437, %v1436
        %v1453 = vpack.c.b16 %v1439, %v1438
        %v1454 = vpack.c.b16 %v1441, %v1440
        %v1455 = vpack.c.b16 %v1443, %v1442
        %v1456 = vpack.c.b16 %v1445, %v1444
        %v1457 = vpack.c.b16 %v1447, %v1446
        %v1458 = vpack.c.b16 %v1449, %v1448
        %v1459 = vpack.c.b16 %v1451, %v1450
        %v1484 = vunpack.c.l.b16 %v1397
        %v1485 = vunpack.c.l.b16 %v1398
        %v1486 = vunpack.c.l.b16 %v1399
        %v1487 = vunpack.c.l.b16 %v1400
        %v1488 = vunpack.c.l.b16 %v1401
        %v1489 = vunpack.c.l.b16 %v1402
        %v1490 = vunpack.c.l.b16 %v1403
        %v1491 = vunpack.c.l.b16 %v1404
        %v1492 = vunpack.c.l.b16 %v1405
        %v1493 = vunpack.c.l.b16 %v1406
        %v1494 = vunpack.c.l.b16 %v1407
        %v1495 = vunpack.c.l.b16 %v1408
        %v1496 = vunpack.c.l.b16 %v1409
        %v1497 = vunpack.c.l.b16 %v1410
        %v1498 = vunpack.c.l.b16 %v1411
        %v1499 = vunpack.c.l.b16 %v1412
        %v1500 = vpack.c.b16 %v1485, %v1484
        %v1501 = vpack.c.b16 %v1487, %v1486
        %v1502 = vpack.c.b16 %v1489, %v1488
        %v1503 = vpack.c.b16 %v1491, %v1490
        %v1504 = vpack.c.b16 %v1493, %v1492
        %v1505 = vpack.c.b16 %v1495, %v1494
        %v1506 = vpack.c.b16 %v1497, %v1496
        %v1507 = vpack.c.b16 %v1499, %v1498
        %1516 = vmatprep.subr.bf16.mxu0 0
        %1517 = vmatpush1.bf16.msra.mxu0 %v1507
        %1518 = vmatprep.subr.bf16.mxu0 0
        %1519 = vmatpush1.bf16.msra.mxu0 %v1506
        %1520 = vmatprep.subr.bf16.mxu0 0
        %1521 = vmatpush1.bf16.msra.mxu0 %v1505
        %1522 = vmatprep.subr.bf16.mxu0 0
        %1523 = vmatpush1.bf16.msra.mxu0 %v1504
        %1524 = vmatprep.subr.bf16.mxu0 0
        %1525 = vmatpush1.bf16.msra.mxu0 %v1503
        %1526 = vmatprep.subr.bf16.mxu0 0
        %1527 = vmatpush1.bf16.msra.mxu0 %v1502
        %1528 = vmatprep.subr.bf16.mxu0 0
        %1529 = vmatpush1.bf16.msra.mxu0 %v1501
        %1530 = vmatprep.subr.bf16.mxu0 0
        %1531 = vmatpush1.bf16.msra.mxu0 %v1500
        %1532 = vmatprep.subr.bf16.mxu0 0
        %1533 = vmatpush2.bf16.msra.mxu0 0
        %1534 = vmatprep.subr.bf16.mxu0 0
        %1535 = vmatpush2.bf16.msra.mxu0 0
        %1536 = vmatprep.subr.bf16.mxu0 0
        %1537 = vmatpush2.bf16.msra.mxu0 0
        %1538 = vmatprep.subr.bf16.mxu0 0
        %1539 = vmatpush2.bf16.msra.mxu0 0
        %1540 = vmatprep.subr.bf16.mxu0 0
        %1541 = vmatpush2.bf16.msra.mxu0 0
        %1542 = vmatprep.subr.bf16.mxu0 0
        %1543 = vmatpush2.bf16.msra.mxu0 0
        %1544 = vmatprep.subr.bf16.mxu0 0
        %1545 = vmatpush2.bf16.msra.mxu0 0
        %1546 = vmatprep.subr.bf16.mxu0 0
        %1547 = vmatpush2.bf16.msra.mxu0 0
        %1548 = vmatprep.mubr.bf16.mxu0 0
        %1549 = vmatmul.mubr.bf16.gmra.mxu0 %v1452
        %v1550 = vpop.f32.mrf.mxu0
        %v1551 = vadd.f32 %v1418, %v1550
        %v1552 = vpop.f32.mrf.mxu0
        %v1553 = vpop.f32.mrf.mxu0
        %v1554 = vadd.f32 %v1418, %v1553
        %v1555 = vpop.f32.mrf.mxu0
        %1556 = vmatprep.mubr.bf16.mxu0 0
        %1557 = vmatmul.mubr.bf16.gmra.mxu0 %v1453
        %v1558 = vpop.f32.mrf.mxu0
        %v1559 = vadd.f32 %v1418, %v1558
        %v1560 = vpop.f32.mrf.mxu0
        %v1561 = vpop.f32.mrf.mxu0
        %v1562 = vadd.f32 %v1418, %v1561
        %v1563 = vpop.f32.mrf.mxu0
        %1564 = vmatprep.mubr.bf16.mxu0 0
        %1565 = vmatmul.mubr.bf16.gmra.mxu0 %v1454
        %v1566 = vpop.f32.mrf.mxu0
        %v1567 = vadd.f32 %v1418, %v1566
        %v1568 = vpop.f32.mrf.mxu0
        %v1569 = vpop.f32.mrf.mxu0
        %v1570 = vadd.f32 %v1418, %v1569
        %v1571 = vpop.f32.mrf.mxu0
        %1572 = vmatprep.mubr.bf16.mxu0 0
        %1573 = vmatmul.mubr.bf16.gmra.mxu0 %v1455
        %v1574 = vpop.f32.mrf.mxu0
        %v1575 = vadd.f32 %v1418, %v1574
        %v1576 = vpop.f32.mrf.mxu0
        %v1577 = vpop.f32.mrf.mxu0
        %v1578 = vadd.f32 %v1418, %v1577
        %v1579 = vpop.f32.mrf.mxu0
        %1580 = vmatprep.mubr.bf16.mxu0 0
        %1581 = vmatmul.mubr.bf16.gmra.mxu0 %v1456
        %v1582 = vpop.f32.mrf.mxu0
        %v1583 = vadd.f32 %v1418, %v1582
        %v1584 = vpop.f32.mrf.mxu0
        %v1585 = vpop.f32.mrf.mxu0
        %v1586 = vadd.f32 %v1418, %v1585
        %v1587 = vpop.f32.mrf.mxu0
        %1588 = vmatprep.mubr.bf16.mxu0 0
        %1589 = vmatmul.mubr.bf16.gmra.mxu0 %v1457
        %v1590 = vpop.f32.mrf.mxu0
        %v1591 = vadd.f32 %v1418, %v1590
        %v1592 = vpop.f32.mrf.mxu0
        %v1593 = vpop.f32.mrf.mxu0
        %v1594 = vadd.f32 %v1418, %v1593
        %v1595 = vpop.f32.mrf.mxu0
        %1596 = vmatprep.mubr.bf16.mxu0 0
        %1597 = vmatmul.mubr.bf16.gmra.mxu0 %v1458
        %v1598 = vpop.f32.mrf.mxu0
        %v1599 = vadd.f32 %v1418, %v1598
        %v1600 = vpop.f32.mrf.mxu0
        %v1601 = vpop.f32.mrf.mxu0
        %v1602 = vadd.f32 %v1418, %v1601
        %v1603 = vpop.f32.mrf.mxu0
        %1604 = vmatprep.mubr.bf16.mxu0 0
        %1605 = vmatmul.mubr.bf16.gmra.mxu0 %v1459
        %v1606 = vpop.f32.mrf.mxu0
        %v1607 = vadd.f32 %v1418, %v1606
        %v1608 = vpop.f32.mrf.mxu0
        %v1609 = vpop.f32.mrf.mxu0
        %v1610 = vadd.f32 %v1418, %v1609
        %v1611 = vpop.f32.mrf.mxu0
        %1612 = vdwg.mxu0
        %1613 = vst [vmem:[%s407] sm:$0xff] %v1551
        %1614 = vst [vmem:[%s407 + $0x8] sm:$0xff] %v1554
        %1615 = vst [vmem:[%s407 + $0x10] sm:$0xff] %v1559
        %1616 = vst [vmem:[%s407 + $0x18] sm:$0xff] %v1562
        %1617 = vst [vmem:[%s407 + $0x20] sm:$0xff] %v1567
        %1618 = vst [vmem:[%s407 + $0x28] sm:$0xff] %v1570
        %1619 = vst [vmem:[%s407 + $0x30] sm:$0xff] %v1575
        %1620 = vst [vmem:[%s407 + $0x38] sm:$0xff] %v1578
        %1621 = vst [vmem:[%s407 + $0x40] sm:$0xff] %v1583
        %1622 = vst [vmem:[%s407 + $0x48] sm:$0xff] %v1586
        %1623 = vst [vmem:[%s407 + $0x50] sm:$0xff] %v1591
        %1624 = vst [vmem:[%s407 + $0x58] sm:$0xff] %v1594
        %1625 = vst [vmem:[%s407 + $0x60] sm:$0xff] %v1599
        %1626 = vst [vmem:[%s407 + $0x68] sm:$0xff] %v1602
        %1627 = vst [vmem:[%s407 + $0x70] sm:$0xff] %v1607
        %1628 = vst [vmem:[%s407 + $0x78] sm:$0xff] %v1610
      $region60: #{gcn_forward.1} parent=43 // pred_fallthru
        _
      %p1629 = scmp.eq.s32.totalorder %s21, 3
      %s1630 = scalar_select %p1629, %s22, 0
      %s1631 = smul.u32 16, %s1630
      %p1632 = scmp.lt.s32.totalorder %s1631, 15
      %s1633 = scalar_select %p1632, %s1631, 15
      %s1634 = smul.addr %s1633, 8
      %s1635 = scalar_lea.vmem %s6, %s1634
      // Predicated region
      $region61: #{gcn_forward.1} parent=43 // pred_check
        %p1636 = pneg %p219
      $region62: #{gcn_forward.1} parent=43 // pred_check_branch
        %1638 = sbr.rel (%p1636) target = $region64
      $region63: #{gcn_forward.1} parent=43 // pred_region
        %p1639 = scmp.eq.s32.totalorder %s21, 3
        %s1640 = scalar_select %p1639, %s22, 0
        %s1641 = smul.u32 16, %s1640
      $region64: #{gcn_forward.1} parent=43 // pred_fallthru
        _
    $region44: #{gcn_forward.1} parent=5 // pred_fallthru
      _
    %p1642 = scmp.le.s32.totalorder 2, %s12
    // Predicated region
    $region65: #{gcn_forward.1} parent=5 // pred_check
      %p1643 = pneg %p1642
    $region66: #{gcn_forward.1} parent=5 // pred_check_branch
      %1645 = sbr.rel (%p1643) target = $region68
    $region67: #{gcn_forward.1} parent=5 // pred_region
      %s1646 = ssub.s32 %s12, 2
      // Predicated region
      $region69: #{gcn_forward.1} parent=67 // pred_check
        %p1647 = pneg %p225
      $region70: #{gcn_forward.1} parent=67 // pred_check_branch
        %1649 = sbr.rel (%p1647) target = $region72
      $region71: #{gcn_forward.1} parent=67 // pred_region
        %p1650 = scmp.eq.s32.totalorder %s23, 3
        %s1651 = scalar_select %p1650, %s24, 0
        %s1652 = smul.u32 16, %s1651
        %p1653 = scmp.lt.s32.totalorder %s1652, 15
        %s1654 = scalar_select %p1653, %s1652, 15
        %s1655 = smul.addr %s1654, 8
        %s1656 = scalar_lea.vmem %s6, %s1655
      $region72: #{gcn_forward.1} parent=67 // pred_fallthru
        _
    $region68: #{gcn_forward.1} parent=5 // pred_fallthru
      _
  $region6: #{gcn_forward.1} parent=0 // loop_footer
    %s16 = sadd.s32 1, %s12
  $region7: #{gcn_forward.1} parent=0 // loop_footer_branch
    %11 = sbr.rel target = $region3
  $region8: #{gcn_forward.1} parent=0 // loop_exit
    _

</llo_original>
